<compile_context>
chip_gen: v6e
topology: v6e:2x2x1
jax: 0.10.0
libtpu: 0.0.40
codegen_flags: <defaults>
</compile_context>

<pallas_src>
import functools
import math

import numpy as np
import jax
import jax.numpy as jnp
from jax import lax
from jax.experimental import pallas as pl
from jax.experimental.pallas import tpu as pltpu  # noqa: F401  (no TPU-specific params needed at this size)


# ----------------------------- Pallas kernel -------------------------------

def _make_stack_lstm_kernel(num_layers, hidden_size, seq_len, batch_pad):
    """Whole LSTM stack, layer-outer / time-inner, single invocation.

    Ref layout (all whole-array VMEM-resident):
      gx0_ref          : (T, B, 4H) f32   precomputed layer-0 input gates
                                          (x @ W_ih0^T + b0, g-rows pre-scaled)
      w_in_refs[l-1]   : (H, 4H)    bf16  layer-l (l>=1) input weights W_ih^T
      b_refs[l-1]      : (1, 4H)    f32   layer-l (l>=1) bias (b_ih + b_hh)
      w_hh_refs[l]     : (H, 4H)    bf16  recurrent weights W_hh^T
      out_ref          : (T, B, L*H) f32  hidden-state sequences of all layers
    Gate order (PyTorch): i, f, g, o.  g rows are pre-scaled x2 so
    tanh(a) = 2*sigmoid(2a) - 1 folds into the single full-width sigmoid.
    """
    H, T, L, B = hidden_size, seq_len, num_layers, batch_pad
    n_in = L - 1

    def kernel(gx0_ref, *refs):
        w_in_refs = refs[0:n_in]
        b_refs = refs[n_in:2 * n_in]
        w_hh_refs = refs[2 * n_in:2 * n_in + L]
        out_ref = refs[2 * n_in + L]

        def run_layer(get_gx, w_hh_ref):
            # Serial recurrence: per step only h@W_hh (8x32x128 bf16 MXU, f32
            # acc), one full-width sigmoid, one tanh(c), and a few VPU ops.
            h = jnp.zeros((B, H), jnp.float32)
            c = jnp.zeros((B, H), jnp.float32)
            h_list = []
            for t in range(T):  # fully unrolled: T small & static
                gates = get_gx(t) + jnp.dot(
                    h.astype(jnp.bfloat16), w_hh_ref[...],
                    preferred_element_type=jnp.float32)          # (B, 4H)
                sg = jax.nn.sigmoid(gates)                       # one EUP pass
                i_g = sg[:, 0 * H:1 * H]
                f_g = sg[:, 1 * H:2 * H]
                o_g = sg[:, 3 * H:4 * H]
                g_g = 2.0 * sg[:, 2 * H:3 * H] - 1.0             # folded tanh
                c = f_g * c + i_g * g_g
                h = o_g * jnp.tanh(c)
                h_list.append(h)
            return jnp.concatenate(h_list, axis=0)               # (T*B, H)

        # Layer 0: input gates precomputed in the wrapper (lane-dense block).
        get_gx = lambda t: gx0_ref[t]
        for l in range(L):
            h_stack = run_layer(get_gx, w_hh_refs[l])            # (T*B, H)
            # One bulk, lane-aligned store of this layer's whole sequence.
            out_ref[:, :, l * H:(l + 1) * H] = h_stack.reshape(T, B, H)
            if l + 1 < L:
                # Next layer's input projection: ONE batched GEMM over all
                # timesteps, off the serial chain.
                gx_all = (jnp.dot(h_stack.astype(jnp.bfloat16),
                                  w_in_refs[l][...],
                                  preferred_element_type=jnp.float32)
                          + b_refs[l][...])                      # (T*B, 4H)
                get_gx = (lambda g: (lambda t: g[t * B:(t + 1) * B, :]))(gx_all)

    return kernel


def stack_lstm_pallas(gx0, w_in_rest, b_rest, w_hh_list, hidden_size):
    """gx0: (T, B_pad, 4H) precomputed layer-0 input gates (B_pad % 8 == 0).
    Returns (T, B_pad, L*H) hidden-state sequences of all layers."""
    T, B, _ = gx0.shape
    H = hidden_size
    L = len(w_hh_list)
    kernel = _make_stack_lstm_kernel(L, H, T, B)

    # No grid, no BlockSpecs: single invocation, whole arrays resident in
    # VMEM, single-buffered (grid=(1,) double-buffering would be pure waste).
    return pl.pallas_call(
        kernel,
        out_shape=jax.ShapeDtypeStruct((T, B, L * H), jnp.float32),
    )(gx0, *w_in_rest, *b_rest, *w_hh_list)


# ------------------------------- StackRNN ----------------------------------

def init_stack_lstm_params(key, input_size, hidden_size, num_layers):
    """PyTorch-shaped LSTM params, uniform(-1/sqrt(H), 1/sqrt(H))."""
    params = []
    k = 1.0 / math.sqrt(hidden_size)
    for layer in range(num_layers):
        in_dim = input_size if layer == 0 else hidden_size
        key, k1, k2, k3, k4 = jax.random.split(key, 5)
        params.append(dict(
            w_ih=jax.random.uniform(k1, (4 * hidden_size, in_dim),
                                    minval=-k, maxval=k, dtype=jnp.float32),
            w_hh=jax.random.uniform(k2, (4 * hidden_size, hidden_size),
                                    minval=-k, maxval=k, dtype=jnp.float32),
            b_ih=jax.random.uniform(k3, (4 * hidden_size,),
                                    minval=-k, maxval=k, dtype=jnp.float32),
            b_hh=jax.random.uniform(k4, (4 * hidden_size,),
                                    minval=-k, maxval=k, dtype=jnp.float32),
        ))
    return params


def prepare_params(params, hidden_size):
    """One-time conversion to kernel layout (OUTSIDE the forward):
      * weights transposed to (in, 4H), biases summed (b_ih + b_hh);
      * g-gate (cell-gate) rows/entries pre-scaled by 2 so the kernel can use
        tanh(a) = 2*sigmoid(2a) - 1 from its single full-width sigmoid;
      * in-kernel matmul operands cast to bf16 (f32 accumulation in-kernel);
      * layer-0 input-projection weight kept f32 (runs in XLA, off-chain)."""
    H = hidden_size

    def prescale_w(w):                       # (4H, in): scale g-gate rows
        return w.at[2 * H:3 * H].multiply(2.0)

    def prescale_b(b):                       # (4H,)
        return b.at[2 * H:3 * H].multiply(2.0)

    p0 = params[0]
    w_in0 = prescale_w(p0["w_ih"]).T.astype(jnp.float32)           # (D, 4H)
    b0 = prescale_b(p0["b_ih"] + p0["b_hh"]).astype(jnp.float32)   # (4H,)

    w_in_rest, b_rest, w_hh_list = [], [], []
    for i, p in enumerate(params):
        w_hh_list.append(prescale_w(p["w_hh"]).T.astype(jnp.bfloat16))   # (H,4H)
        if i > 0:
            w_in_rest.append(prescale_w(p["w_ih"]).T.astype(jnp.bfloat16))
            b_rest.append(prescale_b(p["b_ih"] + p["b_hh"])
                          .reshape(1, -1).astype(jnp.float32))           # (1,4H)

    return dict(w_in0=w_in0, b0=b0, w_in_rest=tuple(w_in_rest),
                b_rest=tuple(b_rest), w_hh=tuple(w_hh_list))


def stack_rnn_forward(x_bf, kp, hidden_size):
    """StackRNN.forward: x (B, T, D) batch_first ->
    torch.cat([x, y_1, ..., y_L], dim=2) of shape (B, T, D + L*H)."""
    B, T, D = x_bf.shape
    H = hidden_size

    # Single boundary transpose to time-major; pad batch to a full f32
    # sublane multiple (8).  Padded rows are independent and sliced off below.
    x_tm = jnp.transpose(x_bf, (1, 0, 2))                    # (T, B, D)
    B_pad = ((B + 7) // 8) * 8
    if B_pad != B:
        x_tm = jnp.pad(x_tm, ((0, 0), (0, B_pad - B), (0, 0)))

    # Layer-0 input projection hoisted out of the kernel: one XLA GEMM over
    # all timesteps, producing a lane-dense (T, B_pad, 4H=128) gate block.
    gx0 = jnp.einsum('tbd,dg->tbg', x_tm, kp["w_in0"]) + kp["b0"]

    h_tm = stack_lstm_pallas(gx0, kp["w_in_rest"], kp["b_rest"],
                             kp["w_hh"], H)                  # (T, B_pad, L*H)
    h_bf = jnp.transpose(h_tm[:, :B, :], (1, 0, 2))          # (B, T, L*H)
    return jnp.concatenate([x_bf, h_bf], axis=-1)            # cat([x, y1..yL])


# ------------------------- pure-JAX reference (check) ------------------------

def _lstm_layer_ref(x_tm, w_ih, w_hh, b_ih, b_hh):
    T, B, _ = x_tm.shape
    H = w_hh.shape[1]

    def step(carry, x_t):
        h, c = carry
        gates = x_t @ w_ih.T + h @ w_hh.T + b_ih + b_hh
        i = jax.nn.sigmoid(gates[:, 0 * H:1 * H])
        f = jax.nn.sigmoid(gates[:, 1 * H:2 * H])
        g = jnp.tanh(gates[:, 2 * H:3 * H])
        o = jax.nn.sigmoid(gates[:, 3 * H:4 * H])
        c = f * c + i * g
        h = o * jnp.tanh(c)
        return (h, c), h

    init = (jnp.zeros((B, H), jnp.float32), jnp.zeros((B, H), jnp.float32))
    _, ys = lax.scan(step, init, x_tm)
    return ys


def stack_rnn_ref(x_bf, params):
    outputs_bf = [x_bf]
    cur_tm = jnp.transpose(x_bf, (1, 0, 2))
    for p in params:
        cur_tm = _lstm_layer_ref(cur_tm, p["w_ih"], p["w_hh"],
                                 p["b_ih"], p["b_hh"])
        outputs_bf.append(jnp.transpose(cur_tm, (1, 0, 2)))
    return jnp.concatenate(outputs_bf, axis=2)


# ---------------------------------- main ------------------------------------

if __name__ == "__main__":
    # StackRNN config: cell='LSTM', input_size=16, hidden_size=32,
    # num_layers=2, batch_first=True, dropout=0.0, bidirectional=False.
    # (per-layer dropout is a no-op for single-layer nn.LSTM sub-modules.)
    B, T, D, H, L = 2, 8, 16, 32, 2

    key = jax.random.PRNGKey(0)
    key, kx = jax.random.split(key)
    x = jax.random.normal(kx, (B, T, D), dtype=jnp.float32)

    params = init_stack_lstm_params(key, D, H, L)
    kernel_params = prepare_params(params, H)   # hoisted: kernel-layout params

    fwd = jax.jit(functools.partial(stack_rnn_forward, hidden_size=H))
    out = jax.block_until_ready(fwd(x, kernel_params))
    assert out.shape == (B, T, D + L * H), out.shape

    ref = jax.block_until_ready(stack_rnn_ref(x, params))
    # bf16 recurrent/input matmuls (f32 accumulation) bound the worst-case
    # deviation at ~1e-3 over T=8 steps x L=2 layers; 3e-3 still catches any
    # semantic bug (gate order, bias, prescale) by orders of magnitude.
    np.testing.assert_allclose(np.asarray(out), np.asarray(ref),
                               rtol=3e-3, atol=3e-3)

    print("KERNEL_OK")
</pallas_src>

<mosaic_0001>
module attributes {stable_mosaic.version = 11 : i64} {
  func.func @kernel(%arg0: memref<8x8x128xf32, #tpu.memory_space<vmem>>, %arg1: memref<32x128xbf16, #tpu.memory_space<vmem>>, %arg2: memref<1x128xf32, #tpu.memory_space<vmem>>, %arg3: memref<32x128xbf16, #tpu.memory_space<vmem>>, %arg4: memref<32x128xbf16, #tpu.memory_space<vmem>>, %arg5: memref<8x8x64xf32, #tpu.memory_space<vmem>>) attributes {dimension_semantics = [], scalar_prefetch = 0 : i64, scratch_operands = 0 : i64, tpu.core_type = #tpu.core_type<tc>} {
    %cst = arith.constant 0.000000e+00 : f32
    %0 = vector.broadcast %cst : f32 to vector<8x32xf32>
    %cst_0 = arith.constant 0.000000e+00 : f32
    %1 = vector.broadcast %cst_0 : f32 to vector<8x32xf32>
    %c0 = arith.constant 0 : index
    %c0_1 = arith.constant 0 : index
    %c0_2 = arith.constant 0 : index
    %2 = vector.load %arg0[%c0, %c0_1, %c0_2] : memref<8x8x128xf32, #tpu.memory_space<vmem>>, vector<1x8x128xf32>
    %3 = vector.shape_cast %2 : vector<1x8x128xf32> to vector<8x128xf32>
    %4 = arith.truncf %0 : vector<8x32xf32> to vector<8x32xbf16>
    %c0_3 = arith.constant 0 : index
    %c0_4 = arith.constant 0 : index
    %5 = vector.load %arg3[%c0_3, %c0_4] : memref<32x128xbf16, #tpu.memory_space<vmem>>, vector<32x128xbf16>
    %cst_5 = arith.constant dense<0.000000e+00> : vector<8x128xf32>
    %6 = tpu.matmul %4, %5, %cst_5 {dimension_numbers = #tpu.dot_dimension_numbers<[1], [0], [0], [1], [0, 0, 1, 1], [], []>} : vector<8x32xbf16>, vector<32x128xbf16>, vector<8x128xf32> -> vector<8x128xf32>
    %7 = arith.addf %3, %6 : vector<8x128xf32>
    %8 = arith.negf %7 : vector<8x128xf32>
    %9 = math.exp %8 : vector<8x128xf32>
    %cst_6 = arith.constant 1.000000e+00 : f32
    %10 = vector.broadcast %cst_6 : f32 to vector<8x128xf32>
    %11 = arith.addf %10, %9 : vector<8x128xf32>
    %12 = arith.divf %10, %11 : vector<8x128xf32>
    %13 = vector.extract_strided_slice %12 {offsets = [0, 0], sizes = [8, 32], strides = [1, 1]} : vector<8x128xf32> to vector<8x32xf32>
    %14 = vector.extract_strided_slice %12 {offsets = [0, 32], sizes = [8, 32], strides = [1, 1]} : vector<8x128xf32> to vector<8x32xf32>
    %15 = vector.extract_strided_slice %12 {offsets = [0, 96], sizes = [8, 32], strides = [1, 1]} : vector<8x128xf32> to vector<8x32xf32>
    %16 = vector.extract_strided_slice %12 {offsets = [0, 64], sizes = [8, 32], strides = [1, 1]} : vector<8x128xf32> to vector<8x32xf32>
    %cst_7 = arith.constant 2.000000e+00 : f32
    %17 = vector.broadcast %cst_7 : f32 to vector<8x32xf32>
    %18 = arith.mulf %17, %16 : vector<8x32xf32>
    %cst_8 = arith.constant 1.000000e+00 : f32
    %19 = vector.broadcast %cst_8 : f32 to vector<8x32xf32>
    %20 = arith.subf %18, %19 : vector<8x32xf32>
    %21 = arith.mulf %14, %1 : vector<8x32xf32>
    %22 = arith.mulf %13, %20 : vector<8x32xf32>
    %23 = arith.addf %21, %22 : vector<8x32xf32>
    %24 = math.tanh %23 : vector<8x32xf32>
    %25 = arith.mulf %15, %24 : vector<8x32xf32>
    %c1 = arith.constant 1 : index
    %c0_9 = arith.constant 0 : index
    %c0_10 = arith.constant 0 : index
    %26 = vector.load %arg0[%c1, %c0_9, %c0_10] : memref<8x8x128xf32, #tpu.memory_space<vmem>>, vector<1x8x128xf32>
    %27 = vector.shape_cast %26 : vector<1x8x128xf32> to vector<8x128xf32>
    %28 = arith.truncf %25 : vector<8x32xf32> to vector<8x32xbf16>
    %c0_11 = arith.constant 0 : index
    %c0_12 = arith.constant 0 : index
    %29 = vector.load %arg3[%c0_11, %c0_12] : memref<32x128xbf16, #tpu.memory_space<vmem>>, vector<32x128xbf16>
    %cst_13 = arith.constant dense<0.000000e+00> : vector<8x128xf32>
    %30 = tpu.matmul %28, %29, %cst_13 {dimension_numbers = #tpu.dot_dimension_numbers<[1], [0], [0], [1], [0, 0, 1, 1], [], []>} : vector<8x32xbf16>, vector<32x128xbf16>, vector<8x128xf32> -> vector<8x128xf32>
    %31 = arith.addf %27, %30 : vector<8x128xf32>
    %32 = arith.negf %31 : vector<8x128xf32>
    %33 = math.exp %32 : vector<8x128xf32>
    %cst_14 = arith.constant 1.000000e+00 : f32
    %34 = vector.broadcast %cst_14 : f32 to vector<8x128xf32>
    %35 = arith.addf %34, %33 : vector<8x128xf32>
    %36 = arith.divf %34, %35 : vector<8x128xf32>
    %37 = vector.extract_strided_slice %36 {offsets = [0, 0], sizes = [8, 32], strides = [1, 1]} : vector<8x128xf32> to vector<8x32xf32>
    %38 = vector.extract_strided_slice %36 {offsets = [0, 32], sizes = [8, 32], strides = [1, 1]} : vector<8x128xf32> to vector<8x32xf32>
    %39 = vector.extract_strided_slice %36 {offsets = [0, 96], sizes = [8, 32], strides = [1, 1]} : vector<8x128xf32> to vector<8x32xf32>
    %40 = vector.extract_strided_slice %36 {offsets = [0, 64], sizes = [8, 32], strides = [1, 1]} : vector<8x128xf32> to vector<8x32xf32>
    %cst_15 = arith.constant 2.000000e+00 : f32
    %41 = vector.broadcast %cst_15 : f32 to vector<8x32xf32>
    %42 = arith.mulf %41, %40 : vector<8x32xf32>
    %cst_16 = arith.constant 1.000000e+00 : f32
    %43 = vector.broadcast %cst_16 : f32 to vector<8x32xf32>
    %44 = arith.subf %42, %43 : vector<8x32xf32>
    %45 = arith.mulf %38, %23 : vector<8x32xf32>
    %46 = arith.mulf %37, %44 : vector<8x32xf32>
    %47 = arith.addf %45, %46 : vector<8x32xf32>
    %48 = math.tanh %47 : vector<8x32xf32>
    %49 = arith.mulf %39, %48 : vector<8x32xf32>
    %c2 = arith.constant 2 : index
    %c0_17 = arith.constant 0 : index
    %c0_18 = arith.constant 0 : index
    %50 = vector.load %arg0[%c2, %c0_17, %c0_18] : memref<8x8x128xf32, #tpu.memory_space<vmem>>, vector<1x8x128xf32>
    %51 = vector.shape_cast %50 : vector<1x8x128xf32> to vector<8x128xf32>
    %52 = arith.truncf %49 : vector<8x32xf32> to vector<8x32xbf16>
    %c0_19 = arith.constant 0 : index
    %c0_20 = arith.constant 0 : index
    %53 = vector.load %arg3[%c0_19, %c0_20] : memref<32x128xbf16, #tpu.memory_space<vmem>>, vector<32x128xbf16>
    %cst_21 = arith.constant dense<0.000000e+00> : vector<8x128xf32>
    %54 = tpu.matmul %52, %53, %cst_21 {dimension_numbers = #tpu.dot_dimension_numbers<[1], [0], [0], [1], [0, 0, 1, 1], [], []>} : vector<8x32xbf16>, vector<32x128xbf16>, vector<8x128xf32> -> vector<8x128xf32>
    %55 = arith.addf %51, %54 : vector<8x128xf32>
    %56 = arith.negf %55 : vector<8x128xf32>
    %57 = math.exp %56 : vector<8x128xf32>
    %cst_22 = arith.constant 1.000000e+00 : f32
    %58 = vector.broadcast %cst_22 : f32 to vector<8x128xf32>
    %59 = arith.addf %58, %57 : vector<8x128xf32>
    %60 = arith.divf %58, %59 : vector<8x128xf32>
    %61 = vector.extract_strided_slice %60 {offsets = [0, 0], sizes = [8, 32], strides = [1, 1]} : vector<8x128xf32> to vector<8x32xf32>
    %62 = vector.extract_strided_slice %60 {offsets = [0, 32], sizes = [8, 32], strides = [1, 1]} : vector<8x128xf32> to vector<8x32xf32>
    %63 = vector.extract_strided_slice %60 {offsets = [0, 96], sizes = [8, 32], strides = [1, 1]} : vector<8x128xf32> to vector<8x32xf32>
    %64 = vector.extract_strided_slice %60 {offsets = [0, 64], sizes = [8, 32], strides = [1, 1]} : vector<8x128xf32> to vector<8x32xf32>
    %cst_23 = arith.constant 2.000000e+00 : f32
    %65 = vector.broadcast %cst_23 : f32 to vector<8x32xf32>
    %66 = arith.mulf %65, %64 : vector<8x32xf32>
    %cst_24 = arith.constant 1.000000e+00 : f32
    %67 = vector.broadcast %cst_24 : f32 to vector<8x32xf32>
    %68 = arith.subf %66, %67 : vector<8x32xf32>
    %69 = arith.mulf %62, %47 : vector<8x32xf32>
    %70 = arith.mulf %61, %68 : vector<8x32xf32>
    %71 = arith.addf %69, %70 : vector<8x32xf32>
    %72 = math.tanh %71 : vector<8x32xf32>
    %73 = arith.mulf %63, %72 : vector<8x32xf32>
    %c3 = arith.constant 3 : index
    %c0_25 = arith.constant 0 : index
    %c0_26 = arith.constant 0 : index
    %74 = vector.load %arg0[%c3, %c0_25, %c0_26] : memref<8x8x128xf32, #tpu.memory_space<vmem>>, vector<1x8x128xf32>
    %75 = vector.shape_cast %74 : vector<1x8x128xf32> to vector<8x128xf32>
    %76 = arith.truncf %73 : vector<8x32xf32> to vector<8x32xbf16>
    %c0_27 = arith.constant 0 : index
    %c0_28 = arith.constant 0 : index
    %77 = vector.load %arg3[%c0_27, %c0_28] : memref<32x128xbf16, #tpu.memory_space<vmem>>, vector<32x128xbf16>
    %cst_29 = arith.constant dense<0.000000e+00> : vector<8x128xf32>
    %78 = tpu.matmul %76, %77, %cst_29 {dimension_numbers = #tpu.dot_dimension_numbers<[1], [0], [0], [1], [0, 0, 1, 1], [], []>} : vector<8x32xbf16>, vector<32x128xbf16>, vector<8x128xf32> -> vector<8x128xf32>
    %79 = arith.addf %75, %78 : vector<8x128xf32>
    %80 = arith.negf %79 : vector<8x128xf32>
    %81 = math.exp %80 : vector<8x128xf32>
    %cst_30 = arith.constant 1.000000e+00 : f32
    %82 = vector.broadcast %cst_30 : f32 to vector<8x128xf32>
    %83 = arith.addf %82, %81 : vector<8x128xf32>
    %84 = arith.divf %82, %83 : vector<8x128xf32>
    %85 = vector.extract_strided_slice %84 {offsets = [0, 0], sizes = [8, 32], strides = [1, 1]} : vector<8x128xf32> to vector<8x32xf32>
    %86 = vector.extract_strided_slice %84 {offsets = [0, 32], sizes = [8, 32], strides = [1, 1]} : vector<8x128xf32> to vector<8x32xf32>
    %87 = vector.extract_strided_slice %84 {offsets = [0, 96], sizes = [8, 32], strides = [1, 1]} : vector<8x128xf32> to vector<8x32xf32>
    %88 = vector.extract_strided_slice %84 {offsets = [0, 64], sizes = [8, 32], strides = [1, 1]} : vector<8x128xf32> to vector<8x32xf32>
    %cst_31 = arith.constant 2.000000e+00 : f32
    %89 = vector.broadcast %cst_31 : f32 to vector<8x32xf32>
    %90 = arith.mulf %89, %88 : vector<8x32xf32>
    %cst_32 = arith.constant 1.000000e+00 : f32
    %91 = vector.broadcast %cst_32 : f32 to vector<8x32xf32>
    %92 = arith.subf %90, %91 : vector<8x32xf32>
    %93 = arith.mulf %86, %71 : vector<8x32xf32>
    %94 = arith.mulf %85, %92 : vector<8x32xf32>
    %95 = arith.addf %93, %94 : vector<8x32xf32>
    %96 = math.tanh %95 : vector<8x32xf32>
    %97 = arith.mulf %87, %96 : vector<8x32xf32>
    %c4 = arith.constant 4 : index
    %c0_33 = arith.constant 0 : index
    %c0_34 = arith.constant 0 : index
    %98 = vector.load %arg0[%c4, %c0_33, %c0_34] : memref<8x8x128xf32, #tpu.memory_space<vmem>>, vector<1x8x128xf32>
    %99 = vector.shape_cast %98 : vector<1x8x128xf32> to vector<8x128xf32>
    %100 = arith.truncf %97 : vector<8x32xf32> to vector<8x32xbf16>
    %c0_35 = arith.constant 0 : index
    %c0_36 = arith.constant 0 : index
    %101 = vector.load %arg3[%c0_35, %c0_36] : memref<32x128xbf16, #tpu.memory_space<vmem>>, vector<32x128xbf16>
    %cst_37 = arith.constant dense<0.000000e+00> : vector<8x128xf32>
    %102 = tpu.matmul %100, %101, %cst_37 {dimension_numbers = #tpu.dot_dimension_numbers<[1], [0], [0], [1], [0, 0, 1, 1], [], []>} : vector<8x32xbf16>, vector<32x128xbf16>, vector<8x128xf32> -> vector<8x128xf32>
    %103 = arith.addf %99, %102 : vector<8x128xf32>
    %104 = arith.negf %103 : vector<8x128xf32>
    %105 = math.exp %104 : vector<8x128xf32>
    %cst_38 = arith.constant 1.000000e+00 : f32
    %106 = vector.broadcast %cst_38 : f32 to vector<8x128xf32>
    %107 = arith.addf %106, %105 : vector<8x128xf32>
    %108 = arith.divf %106, %107 : vector<8x128xf32>
    %109 = vector.extract_strided_slice %108 {offsets = [0, 0], sizes = [8, 32], strides = [1, 1]} : vector<8x128xf32> to vector<8x32xf32>
    %110 = vector.extract_strided_slice %108 {offsets = [0, 32], sizes = [8, 32], strides = [1, 1]} : vector<8x128xf32> to vector<8x32xf32>
    %111 = vector.extract_strided_slice %108 {offsets = [0, 96], sizes = [8, 32], strides = [1, 1]} : vector<8x128xf32> to vector<8x32xf32>
    %112 = vector.extract_strided_slice %108 {offsets = [0, 64], sizes = [8, 32], strides = [1, 1]} : vector<8x128xf32> to vector<8x32xf32>
    %cst_39 = arith.constant 2.000000e+00 : f32
    %113 = vector.broadcast %cst_39 : f32 to vector<8x32xf32>
    %114 = arith.mulf %113, %112 : vector<8x32xf32>
    %cst_40 = arith.constant 1.000000e+00 : f32
    %115 = vector.broadcast %cst_40 : f32 to vector<8x32xf32>
    %116 = arith.subf %114, %115 : vector<8x32xf32>
    %117 = arith.mulf %110, %95 : vector<8x32xf32>
    %118 = arith.mulf %109, %116 : vector<8x32xf32>
    %119 = arith.addf %117, %118 : vector<8x32xf32>
    %120 = math.tanh %119 : vector<8x32xf32>
    %121 = arith.mulf %111, %120 : vector<8x32xf32>
    %c5 = arith.constant 5 : index
    %c0_41 = arith.constant 0 : index
    %c0_42 = arith.constant 0 : index
    %122 = vector.load %arg0[%c5, %c0_41, %c0_42] : memref<8x8x128xf32, #tpu.memory_space<vmem>>, vector<1x8x128xf32>
    %123 = vector.shape_cast %122 : vector<1x8x128xf32> to vector<8x128xf32>
    %124 = arith.truncf %121 : vector<8x32xf32> to vector<8x32xbf16>
    %c0_43 = arith.constant 0 : index
    %c0_44 = arith.constant 0 : index
    %125 = vector.load %arg3[%c0_43, %c0_44] : memref<32x128xbf16, #tpu.memory_space<vmem>>, vector<32x128xbf16>
    %cst_45 = arith.constant dense<0.000000e+00> : vector<8x128xf32>
    %126 = tpu.matmul %124, %125, %cst_45 {dimension_numbers = #tpu.dot_dimension_numbers<[1], [0], [0], [1], [0, 0, 1, 1], [], []>} : vector<8x32xbf16>, vector<32x128xbf16>, vector<8x128xf32> -> vector<8x128xf32>
    %127 = arith.addf %123, %126 : vector<8x128xf32>
    %128 = arith.negf %127 : vector<8x128xf32>
    %129 = math.exp %128 : vector<8x128xf32>
    %cst_46 = arith.constant 1.000000e+00 : f32
    %130 = vector.broadcast %cst_46 : f32 to vector<8x128xf32>
    %131 = arith.addf %130, %129 : vector<8x128xf32>
    %132 = arith.divf %130, %131 : vector<8x128xf32>
    %133 = vector.extract_strided_slice %132 {offsets = [0, 0], sizes = [8, 32], strides = [1, 1]} : vector<8x128xf32> to vector<8x32xf32>
    %134 = vector.extract_strided_slice %132 {offsets = [0, 32], sizes = [8, 32], strides = [1, 1]} : vector<8x128xf32> to vector<8x32xf32>
    %135 = vector.extract_strided_slice %132 {offsets = [0, 96], sizes = [8, 32], strides = [1, 1]} : vector<8x128xf32> to vector<8x32xf32>
    %136 = vector.extract_strided_slice %132 {offsets = [0, 64], sizes = [8, 32], strides = [1, 1]} : vector<8x128xf32> to vector<8x32xf32>
    %cst_47 = arith.constant 2.000000e+00 : f32
    %137 = vector.broadcast %cst_47 : f32 to vector<8x32xf32>
    %138 = arith.mulf %137, %136 : vector<8x32xf32>
    %cst_48 = arith.constant 1.000000e+00 : f32
    %139 = vector.broadcast %cst_48 : f32 to vector<8x32xf32>
    %140 = arith.subf %138, %139 : vector<8x32xf32>
    %141 = arith.mulf %134, %119 : vector<8x32xf32>
    %142 = arith.mulf %133, %140 : vector<8x32xf32>
    %143 = arith.addf %141, %142 : vector<8x32xf32>
    %144 = math.tanh %143 : vector<8x32xf32>
    %145 = arith.mulf %135, %144 : vector<8x32xf32>
    %c6 = arith.constant 6 : index
    %c0_49 = arith.constant 0 : index
    %c0_50 = arith.constant 0 : index
    %146 = vector.load %arg0[%c6, %c0_49, %c0_50] : memref<8x8x128xf32, #tpu.memory_space<vmem>>, vector<1x8x128xf32>
    %147 = vector.shape_cast %146 : vector<1x8x128xf32> to vector<8x128xf32>
    %148 = arith.truncf %145 : vector<8x32xf32> to vector<8x32xbf16>
    %c0_51 = arith.constant 0 : index
    %c0_52 = arith.constant 0 : index
    %149 = vector.load %arg3[%c0_51, %c0_52] : memref<32x128xbf16, #tpu.memory_space<vmem>>, vector<32x128xbf16>
    %cst_53 = arith.constant dense<0.000000e+00> : vector<8x128xf32>
    %150 = tpu.matmul %148, %149, %cst_53 {dimension_numbers = #tpu.dot_dimension_numbers<[1], [0], [0], [1], [0, 0, 1, 1], [], []>} : vector<8x32xbf16>, vector<32x128xbf16>, vector<8x128xf32> -> vector<8x128xf32>
    %151 = arith.addf %147, %150 : vector<8x128xf32>
    %152 = arith.negf %151 : vector<8x128xf32>
    %153 = math.exp %152 : vector<8x128xf32>
    %cst_54 = arith.constant 1.000000e+00 : f32
    %154 = vector.broadcast %cst_54 : f32 to vector<8x128xf32>
    %155 = arith.addf %154, %153 : vector<8x128xf32>
    %156 = arith.divf %154, %155 : vector<8x128xf32>
    %157 = vector.extract_strided_slice %156 {offsets = [0, 0], sizes = [8, 32], strides = [1, 1]} : vector<8x128xf32> to vector<8x32xf32>
    %158 = vector.extract_strided_slice %156 {offsets = [0, 32], sizes = [8, 32], strides = [1, 1]} : vector<8x128xf32> to vector<8x32xf32>
    %159 = vector.extract_strided_slice %156 {offsets = [0, 96], sizes = [8, 32], strides = [1, 1]} : vector<8x128xf32> to vector<8x32xf32>
    %160 = vector.extract_strided_slice %156 {offsets = [0, 64], sizes = [8, 32], strides = [1, 1]} : vector<8x128xf32> to vector<8x32xf32>
    %cst_55 = arith.constant 2.000000e+00 : f32
    %161 = vector.broadcast %cst_55 : f32 to vector<8x32xf32>
    %162 = arith.mulf %161, %160 : vector<8x32xf32>
    %cst_56 = arith.constant 1.000000e+00 : f32
    %163 = vector.broadcast %cst_56 : f32 to vector<8x32xf32>
    %164 = arith.subf %162, %163 : vector<8x32xf32>
    %165 = arith.mulf %158, %143 : vector<8x32xf32>
    %166 = arith.mulf %157, %164 : vector<8x32xf32>
    %167 = arith.addf %165, %166 : vector<8x32xf32>
    %168 = math.tanh %167 : vector<8x32xf32>
    %169 = arith.mulf %159, %168 : vector<8x32xf32>
    %c7 = arith.constant 7 : index
    %c0_57 = arith.constant 0 : index
    %c0_58 = arith.constant 0 : index
    %170 = vector.load %arg0[%c7, %c0_57, %c0_58] : memref<8x8x128xf32, #tpu.memory_space<vmem>>, vector<1x8x128xf32>
    %171 = vector.shape_cast %170 : vector<1x8x128xf32> to vector<8x128xf32>
    %172 = arith.truncf %169 : vector<8x32xf32> to vector<8x32xbf16>
    %c0_59 = arith.constant 0 : index
    %c0_60 = arith.constant 0 : index
    %173 = vector.load %arg3[%c0_59, %c0_60] : memref<32x128xbf16, #tpu.memory_space<vmem>>, vector<32x128xbf16>
    %cst_61 = arith.constant dense<0.000000e+00> : vector<8x128xf32>
    %174 = tpu.matmul %172, %173, %cst_61 {dimension_numbers = #tpu.dot_dimension_numbers<[1], [0], [0], [1], [0, 0, 1, 1], [], []>} : vector<8x32xbf16>, vector<32x128xbf16>, vector<8x128xf32> -> vector<8x128xf32>
    %175 = arith.addf %171, %174 : vector<8x128xf32>
    %176 = arith.negf %175 : vector<8x128xf32>
    %177 = math.exp %176 : vector<8x128xf32>
    %cst_62 = arith.constant 1.000000e+00 : f32
    %178 = vector.broadcast %cst_62 : f32 to vector<8x128xf32>
    %179 = arith.addf %178, %177 : vector<8x128xf32>
    %180 = arith.divf %178, %179 : vector<8x128xf32>
    %181 = vector.extract_strided_slice %180 {offsets = [0, 0], sizes = [8, 32], strides = [1, 1]} : vector<8x128xf32> to vector<8x32xf32>
    %182 = vector.extract_strided_slice %180 {offsets = [0, 32], sizes = [8, 32], strides = [1, 1]} : vector<8x128xf32> to vector<8x32xf32>
    %183 = vector.extract_strided_slice %180 {offsets = [0, 96], sizes = [8, 32], strides = [1, 1]} : vector<8x128xf32> to vector<8x32xf32>
    %184 = vector.extract_strided_slice %180 {offsets = [0, 64], sizes = [8, 32], strides = [1, 1]} : vector<8x128xf32> to vector<8x32xf32>
    %cst_63 = arith.constant 2.000000e+00 : f32
    %185 = vector.broadcast %cst_63 : f32 to vector<8x32xf32>
    %186 = arith.mulf %185, %184 : vector<8x32xf32>
    %cst_64 = arith.constant 1.000000e+00 : f32
    %187 = vector.broadcast %cst_64 : f32 to vector<8x32xf32>
    %188 = arith.subf %186, %187 : vector<8x32xf32>
    %189 = arith.mulf %182, %167 : vector<8x32xf32>
    %190 = arith.mulf %181, %188 : vector<8x32xf32>
    %191 = arith.addf %189, %190 : vector<8x32xf32>
    %192 = math.tanh %191 : vector<8x32xf32>
    %193 = arith.mulf %183, %192 : vector<8x32xf32>
    %194 = tpu.concatenate %25, %49, %73, %97, %121, %145, %169, %193 in 0 : vector<8x32xf32>, vector<8x32xf32>, vector<8x32xf32>, vector<8x32xf32>, vector<8x32xf32>, vector<8x32xf32>, vector<8x32xf32>, vector<8x32xf32> -> vector<64x32xf32>
    %195 = vector.shape_cast %194 : vector<64x32xf32> to vector<8x8x32xf32>
    %c0_65 = arith.constant 0 : index
    %c0_66 = arith.constant 0 : index
    %c0_67 = arith.constant 0 : index
    %196 = vector.load %arg5[%c0_65, %c0_66, %c0_67] : memref<8x8x64xf32, #tpu.memory_space<vmem>>, vector<8x8x32xf32>
    tpu.vector_store %arg5[%c0_65, %c0_66, %c0_67], %195 {strides = array<i32>} : memref<8x8x64xf32, #tpu.memory_space<vmem>>, vector<8x8x32xf32>,
    %197 = arith.truncf %194 : vector<64x32xf32> to vector<64x32xbf16>
    %c0_68 = arith.constant 0 : index
    %c0_69 = arith.constant 0 : index
    %198 = vector.load %arg1[%c0_68, %c0_69] : memref<32x128xbf16, #tpu.memory_space<vmem>>, vector<32x128xbf16>
    %cst_70 = arith.constant dense<0.000000e+00> : vector<64x128xf32>
    %199 = tpu.matmul %197, %198, %cst_70 {dimension_numbers = #tpu.dot_dimension_numbers<[1], [0], [0], [1], [0, 0, 1, 1], [], []>} : vector<64x32xbf16>, vector<32x128xbf16>, vector<64x128xf32> -> vector<64x128xf32>
    %c0_71 = arith.constant 0 : index
    %c0_72 = arith.constant 0 : index
    %200 = vector.load %arg2[%c0_71, %c0_72] : memref<1x128xf32, #tpu.memory_space<vmem>>, vector<1x128xf32>
    %201 = vector.broadcast %200 : vector<1x128xf32> to vector<64x128xf32>
    %202 = arith.addf %199, %201 : vector<64x128xf32>
    %cst_73 = arith.constant 0.000000e+00 : f32
    %203 = vector.broadcast %cst_73 : f32 to vector<8x32xf32>
    %cst_74 = arith.constant 0.000000e+00 : f32
    %204 = vector.broadcast %cst_74 : f32 to vector<8x32xf32>
    %205 = vector.extract_strided_slice %202 {offsets = [0, 0], sizes = [8, 128], strides = [1, 1]} : vector<64x128xf32> to vector<8x128xf32>
    %206 = arith.truncf %203 : vector<8x32xf32> to vector<8x32xbf16>
    %c0_75 = arith.constant 0 : index
    %c0_76 = arith.constant 0 : index
    %207 = vector.load %arg4[%c0_75, %c0_76] : memref<32x128xbf16, #tpu.memory_space<vmem>>, vector<32x128xbf16>
    %cst_77 = arith.constant dense<0.000000e+00> : vector<8x128xf32>
    %208 = tpu.matmul %206, %207, %cst_77 {dimension_numbers = #tpu.dot_dimension_numbers<[1], [0], [0], [1], [0, 0, 1, 1], [], []>} : vector<8x32xbf16>, vector<32x128xbf16>, vector<8x128xf32> -> vector<8x128xf32>
    %209 = arith.addf %205, %208 : vector<8x128xf32>
    %210 = arith.negf %209 : vector<8x128xf32>
    %211 = math.exp %210 : vector<8x128xf32>
    %cst_78 = arith.constant 1.000000e+00 : f32
    %212 = vector.broadcast %cst_78 : f32 to vector<8x128xf32>
    %213 = arith.addf %212, %211 : vector<8x128xf32>
    %214 = arith.divf %212, %213 : vector<8x128xf32>
    %215 = vector.extract_strided_slice %214 {offsets = [0, 0], sizes = [8, 32], strides = [1, 1]} : vector<8x128xf32> to vector<8x32xf32>
    %216 = vector.extract_strided_slice %214 {offsets = [0, 32], sizes = [8, 32], strides = [1, 1]} : vector<8x128xf32> to vector<8x32xf32>
    %217 = vector.extract_strided_slice %214 {offsets = [0, 96], sizes = [8, 32], strides = [1, 1]} : vector<8x128xf32> to vector<8x32xf32>
    %218 = vector.extract_strided_slice %214 {offsets = [0, 64], sizes = [8, 32], strides = [1, 1]} : vector<8x128xf32> to vector<8x32xf32>
    %cst_79 = arith.constant 2.000000e+00 : f32
    %219 = vector.broadcast %cst_79 : f32 to vector<8x32xf32>
    %220 = arith.mulf %219, %218 : vector<8x32xf32>
    %cst_80 = arith.constant 1.000000e+00 : f32
    %221 = vector.broadcast %cst_80 : f32 to vector<8x32xf32>
    %222 = arith.subf %220, %221 : vector<8x32xf32>
    %223 = arith.mulf %216, %204 : vector<8x32xf32>
    %224 = arith.mulf %215, %222 : vector<8x32xf32>
    %225 = arith.addf %223, %224 : vector<8x32xf32>
    %226 = math.tanh %225 : vector<8x32xf32>
    %227 = arith.mulf %217, %226 : vector<8x32xf32>
    %228 = vector.extract_strided_slice %202 {offsets = [8, 0], sizes = [8, 128], strides = [1, 1]} : vector<64x128xf32> to vector<8x128xf32>
    %229 = arith.truncf %227 : vector<8x32xf32> to vector<8x32xbf16>
    %c0_81 = arith.constant 0 : index
    %c0_82 = arith.constant 0 : index
    %230 = vector.load %arg4[%c0_81, %c0_82] : memref<32x128xbf16, #tpu.memory_space<vmem>>, vector<32x128xbf16>
    %cst_83 = arith.constant dense<0.000000e+00> : vector<8x128xf32>
    %231 = tpu.matmul %229, %230, %cst_83 {dimension_numbers = #tpu.dot_dimension_numbers<[1], [0], [0], [1], [0, 0, 1, 1], [], []>} : vector<8x32xbf16>, vector<32x128xbf16>, vector<8x128xf32> -> vector<8x128xf32>
    %232 = arith.addf %228, %231 : vector<8x128xf32>
    %233 = arith.negf %232 : vector<8x128xf32>
    %234 = math.exp %233 : vector<8x128xf32>
    %cst_84 = arith.constant 1.000000e+00 : f32
    %235 = vector.broadcast %cst_84 : f32 to vector<8x128xf32>
    %236 = arith.addf %235, %234 : vector<8x128xf32>
    %237 = arith.divf %235, %236 : vector<8x128xf32>
    %238 = vector.extract_strided_slice %237 {offsets = [0, 0], sizes = [8, 32], strides = [1, 1]} : vector<8x128xf32> to vector<8x32xf32>
    %239 = vector.extract_strided_slice %237 {offsets = [0, 32], sizes = [8, 32], strides = [1, 1]} : vector<8x128xf32> to vector<8x32xf32>
    %240 = vector.extract_strided_slice %237 {offsets = [0, 96], sizes = [8, 32], strides = [1, 1]} : vector<8x128xf32> to vector<8x32xf32>
    %241 = vector.extract_strided_slice %237 {offsets = [0, 64], sizes = [8, 32], strides = [1, 1]} : vector<8x128xf32> to vector<8x32xf32>
    %cst_85 = arith.constant 2.000000e+00 : f32
    %242 = vector.broadcast %cst_85 : f32 to vector<8x32xf32>
    %243 = arith.mulf %242, %241 : vector<8x32xf32>
    %cst_86 = arith.constant 1.000000e+00 : f32
    %244 = vector.broadcast %cst_86 : f32 to vector<8x32xf32>
    %245 = arith.subf %243, %244 : vector<8x32xf32>
    %246 = arith.mulf %239, %225 : vector<8x32xf32>
    %247 = arith.mulf %238, %245 : vector<8x32xf32>
    %248 = arith.addf %246, %247 : vector<8x32xf32>
    %249 = math.tanh %248 : vector<8x32xf32>
    %250 = arith.mulf %240, %249 : vector<8x32xf32>
    %251 = vector.extract_strided_slice %202 {offsets = [16, 0], sizes = [8, 128], strides = [1, 1]} : vector<64x128xf32> to vector<8x128xf32>
    %252 = arith.truncf %250 : vector<8x32xf32> to vector<8x32xbf16>
    %c0_87 = arith.constant 0 : index
    %c0_88 = arith.constant 0 : index
    %253 = vector.load %arg4[%c0_87, %c0_88] : memref<32x128xbf16, #tpu.memory_space<vmem>>, vector<32x128xbf16>
    %cst_89 = arith.constant dense<0.000000e+00> : vector<8x128xf32>
    %254 = tpu.matmul %252, %253, %cst_89 {dimension_numbers = #tpu.dot_dimension_numbers<[1], [0], [0], [1], [0, 0, 1, 1], [], []>} : vector<8x32xbf16>, vector<32x128xbf16>, vector<8x128xf32> -> vector<8x128xf32>
    %255 = arith.addf %251, %254 : vector<8x128xf32>
    %256 = arith.negf %255 : vector<8x128xf32>
    %257 = math.exp %256 : vector<8x128xf32>
    %cst_90 = arith.constant 1.000000e+00 : f32
    %258 = vector.broadcast %cst_90 : f32 to vector<8x128xf32>
    %259 = arith.addf %258, %257 : vector<8x128xf32>
    %260 = arith.divf %258, %259 : vector<8x128xf32>
    %261 = vector.extract_strided_slice %260 {offsets = [0, 0], sizes = [8, 32], strides = [1, 1]} : vector<8x128xf32> to vector<8x32xf32>
    %262 = vector.extract_strided_slice %260 {offsets = [0, 32], sizes = [8, 32], strides = [1, 1]} : vector<8x128xf32> to vector<8x32xf32>
    %263 = vector.extract_strided_slice %260 {offsets = [0, 96], sizes = [8, 32], strides = [1, 1]} : vector<8x128xf32> to vector<8x32xf32>
    %264 = vector.extract_strided_slice %260 {offsets = [0, 64], sizes = [8, 32], strides = [1, 1]} : vector<8x128xf32> to vector<8x32xf32>
    %cst_91 = arith.constant 2.000000e+00 : f32
    %265 = vector.broadcast %cst_91 : f32 to vector<8x32xf32>
    %266 = arith.mulf %265, %264 : vector<8x32xf32>
    %cst_92 = arith.constant 1.000000e+00 : f32
    %267 = vector.broadcast %cst_92 : f32 to vector<8x32xf32>
    %268 = arith.subf %266, %267 : vector<8x32xf32>
    %269 = arith.mulf %262, %248 : vector<8x32xf32>
    %270 = arith.mulf %261, %268 : vector<8x32xf32>
    %271 = arith.addf %269, %270 : vector<8x32xf32>
    %272 = math.tanh %271 : vector<8x32xf32>
    %273 = arith.mulf %263, %272 : vector<8x32xf32>
    %274 = vector.extract_strided_slice %202 {offsets = [24, 0], sizes = [8, 128], strides = [1, 1]} : vector<64x128xf32> to vector<8x128xf32>
    %275 = arith.truncf %273 : vector<8x32xf32> to vector<8x32xbf16>
    %c0_93 = arith.constant 0 : index
    %c0_94 = arith.constant 0 : index
    %276 = vector.load %arg4[%c0_93, %c0_94] : memref<32x128xbf16, #tpu.memory_space<vmem>>, vector<32x128xbf16>
    %cst_95 = arith.constant dense<0.000000e+00> : vector<8x128xf32>
    %277 = tpu.matmul %275, %276, %cst_95 {dimension_numbers = #tpu.dot_dimension_numbers<[1], [0], [0], [1], [0, 0, 1, 1], [], []>} : vector<8x32xbf16>, vector<32x128xbf16>, vector<8x128xf32> -> vector<8x128xf32>
    %278 = arith.addf %274, %277 : vector<8x128xf32>
    %279 = arith.negf %278 : vector<8x128xf32>
    %280 = math.exp %279 : vector<8x128xf32>
    %cst_96 = arith.constant 1.000000e+00 : f32
    %281 = vector.broadcast %cst_96 : f32 to vector<8x128xf32>
    %282 = arith.addf %281, %280 : vector<8x128xf32>
    %283 = arith.divf %281, %282 : vector<8x128xf32>
    %284 = vector.extract_strided_slice %283 {offsets = [0, 0], sizes = [8, 32], strides = [1, 1]} : vector<8x128xf32> to vector<8x32xf32>
    %285 = vector.extract_strided_slice %283 {offsets = [0, 32], sizes = [8, 32], strides = [1, 1]} : vector<8x128xf32> to vector<8x32xf32>
    %286 = vector.extract_strided_slice %283 {offsets = [0, 96], sizes = [8, 32], strides = [1, 1]} : vector<8x128xf32> to vector<8x32xf32>
    %287 = vector.extract_strided_slice %283 {offsets = [0, 64], sizes = [8, 32], strides = [1, 1]} : vector<8x128xf32> to vector<8x32xf32>
    %cst_97 = arith.constant 2.000000e+00 : f32
    %288 = vector.broadcast %cst_97 : f32 to vector<8x32xf32>
    %289 = arith.mulf %288, %287 : vector<8x32xf32>
    %cst_98 = arith.constant 1.000000e+00 : f32
    %290 = vector.broadcast %cst_98 : f32 to vector<8x32xf32>
    %291 = arith.subf %289, %290 : vector<8x32xf32>
    %292 = arith.mulf %285, %271 : vector<8x32xf32>
    %293 = arith.mulf %284, %291 : vector<8x32xf32>
    %294 = arith.addf %292, %293 : vector<8x32xf32>
    %295 = math.tanh %294 : vector<8x32xf32>
    %296 = arith.mulf %286, %295 : vector<8x32xf32>
    %297 = vector.extract_strided_slice %202 {offsets = [32, 0], sizes = [8, 128], strides = [1, 1]} : vector<64x128xf32> to vector<8x128xf32>
    %298 = arith.truncf %296 : vector<8x32xf32> to vector<8x32xbf16>
    %c0_99 = arith.constant 0 : index
    %c0_100 = arith.constant 0 : index
    %299 = vector.load %arg4[%c0_99, %c0_100] : memref<32x128xbf16, #tpu.memory_space<vmem>>, vector<32x128xbf16>
    %cst_101 = arith.constant dense<0.000000e+00> : vector<8x128xf32>
    %300 = tpu.matmul %298, %299, %cst_101 {dimension_numbers = #tpu.dot_dimension_numbers<[1], [0], [0], [1], [0, 0, 1, 1], [], []>} : vector<8x32xbf16>, vector<32x128xbf16>, vector<8x128xf32> -> vector<8x128xf32>
    %301 = arith.addf %297, %300 : vector<8x128xf32>
    %302 = arith.negf %301 : vector<8x128xf32>
    %303 = math.exp %302 : vector<8x128xf32>
    %cst_102 = arith.constant 1.000000e+00 : f32
    %304 = vector.broadcast %cst_102 : f32 to vector<8x128xf32>
    %305 = arith.addf %304, %303 : vector<8x128xf32>
    %306 = arith.divf %304, %305 : vector<8x128xf32>
    %307 = vector.extract_strided_slice %306 {offsets = [0, 0], sizes = [8, 32], strides = [1, 1]} : vector<8x128xf32> to vector<8x32xf32>
    %308 = vector.extract_strided_slice %306 {offsets = [0, 32], sizes = [8, 32], strides = [1, 1]} : vector<8x128xf32> to vector<8x32xf32>
    %309 = vector.extract_strided_slice %306 {offsets = [0, 96], sizes = [8, 32], strides = [1, 1]} : vector<8x128xf32> to vector<8x32xf32>
    %310 = vector.extract_strided_slice %306 {offsets = [0, 64], sizes = [8, 32], strides = [1, 1]} : vector<8x128xf32> to vector<8x32xf32>
    %cst_103 = arith.constant 2.000000e+00 : f32
    %311 = vector.broadcast %cst_103 : f32 to vector<8x32xf32>
    %312 = arith.mulf %311, %310 : vector<8x32xf32>
    %cst_104 = arith.constant 1.000000e+00 : f32
    %313 = vector.broadcast %cst_104 : f32 to vector<8x32xf32>
    %314 = arith.subf %312, %313 : vector<8x32xf32>
    %315 = arith.mulf %308, %294 : vector<8x32xf32>
    %316 = arith.mulf %307, %314 : vector<8x32xf32>
    %317 = arith.addf %315, %316 : vector<8x32xf32>
    %318 = math.tanh %317 : vector<8x32xf32>
    %319 = arith.mulf %309, %318 : vector<8x32xf32>
    %320 = vector.extract_strided_slice %202 {offsets = [40, 0], sizes = [8, 128], strides = [1, 1]} : vector<64x128xf32> to vector<8x128xf32>
    %321 = arith.truncf %319 : vector<8x32xf32> to vector<8x32xbf16>
    %c0_105 = arith.constant 0 : index
    %c0_106 = arith.constant 0 : index
    %322 = vector.load %arg4[%c0_105, %c0_106] : memref<32x128xbf16, #tpu.memory_space<vmem>>, vector<32x128xbf16>
    %cst_107 = arith.constant dense<0.000000e+00> : vector<8x128xf32>
    %323 = tpu.matmul %321, %322, %cst_107 {dimension_numbers = #tpu.dot_dimension_numbers<[1], [0], [0], [1], [0, 0, 1, 1], [], []>} : vector<8x32xbf16>, vector<32x128xbf16>, vector<8x128xf32> -> vector<8x128xf32>
    %324 = arith.addf %320, %323 : vector<8x128xf32>
    %325 = arith.negf %324 : vector<8x128xf32>
    %326 = math.exp %325 : vector<8x128xf32>
    %cst_108 = arith.constant 1.000000e+00 : f32
    %327 = vector.broadcast %cst_108 : f32 to vector<8x128xf32>
    %328 = arith.addf %327, %326 : vector<8x128xf32>
    %329 = arith.divf %327, %328 : vector<8x128xf32>
    %330 = vector.extract_strided_slice %329 {offsets = [0, 0], sizes = [8, 32], strides = [1, 1]} : vector<8x128xf32> to vector<8x32xf32>
    %331 = vector.extract_strided_slice %329 {offsets = [0, 32], sizes = [8, 32], strides = [1, 1]} : vector<8x128xf32> to vector<8x32xf32>
    %332 = vector.extract_strided_slice %329 {offsets = [0, 96], sizes = [8, 32], strides = [1, 1]} : vector<8x128xf32> to vector<8x32xf32>
    %333 = vector.extract_strided_slice %329 {offsets = [0, 64], sizes = [8, 32], strides = [1, 1]} : vector<8x128xf32> to vector<8x32xf32>
    %cst_109 = arith.constant 2.000000e+00 : f32
    %334 = vector.broadcast %cst_109 : f32 to vector<8x32xf32>
    %335 = arith.mulf %334, %333 : vector<8x32xf32>
    %cst_110 = arith.constant 1.000000e+00 : f32
    %336 = vector.broadcast %cst_110 : f32 to vector<8x32xf32>
    %337 = arith.subf %335, %336 : vector<8x32xf32>
    %338 = arith.mulf %331, %317 : vector<8x32xf32>
    %339 = arith.mulf %330, %337 : vector<8x32xf32>
    %340 = arith.addf %338, %339 : vector<8x32xf32>
    %341 = math.tanh %340 : vector<8x32xf32>
    %342 = arith.mulf %332, %341 : vector<8x32xf32>
    %343 = vector.extract_strided_slice %202 {offsets = [48, 0], sizes = [8, 128], strides = [1, 1]} : vector<64x128xf32> to vector<8x128xf32>
    %344 = arith.truncf %342 : vector<8x32xf32> to vector<8x32xbf16>
    %c0_111 = arith.constant 0 : index
    %c0_112 = arith.constant 0 : index
    %345 = vector.load %arg4[%c0_111, %c0_112] : memref<32x128xbf16, #tpu.memory_space<vmem>>, vector<32x128xbf16>
    %cst_113 = arith.constant dense<0.000000e+00> : vector<8x128xf32>
    %346 = tpu.matmul %344, %345, %cst_113 {dimension_numbers = #tpu.dot_dimension_numbers<[1], [0], [0], [1], [0, 0, 1, 1], [], []>} : vector<8x32xbf16>, vector<32x128xbf16>, vector<8x128xf32> -> vector<8x128xf32>
    %347 = arith.addf %343, %346 : vector<8x128xf32>
    %348 = arith.negf %347 : vector<8x128xf32>
    %349 = math.exp %348 : vector<8x128xf32>
    %cst_114 = arith.constant 1.000000e+00 : f32
    %350 = vector.broadcast %cst_114 : f32 to vector<8x128xf32>
    %351 = arith.addf %350, %349 : vector<8x128xf32>
    %352 = arith.divf %350, %351 : vector<8x128xf32>
    %353 = vector.extract_strided_slice %352 {offsets = [0, 0], sizes = [8, 32], strides = [1, 1]} : vector<8x128xf32> to vector<8x32xf32>
    %354 = vector.extract_strided_slice %352 {offsets = [0, 32], sizes = [8, 32], strides = [1, 1]} : vector<8x128xf32> to vector<8x32xf32>
    %355 = vector.extract_strided_slice %352 {offsets = [0, 96], sizes = [8, 32], strides = [1, 1]} : vector<8x128xf32> to vector<8x32xf32>
    %356 = vector.extract_strided_slice %352 {offsets = [0, 64], sizes = [8, 32], strides = [1, 1]} : vector<8x128xf32> to vector<8x32xf32>
    %cst_115 = arith.constant 2.000000e+00 : f32
    %357 = vector.broadcast %cst_115 : f32 to vector<8x32xf32>
    %358 = arith.mulf %357, %356 : vector<8x32xf32>
    %cst_116 = arith.constant 1.000000e+00 : f32
    %359 = vector.broadcast %cst_116 : f32 to vector<8x32xf32>
    %360 = arith.subf %358, %359 : vector<8x32xf32>
    %361 = arith.mulf %354, %340 : vector<8x32xf32>
    %362 = arith.mulf %353, %360 : vector<8x32xf32>
    %363 = arith.addf %361, %362 : vector<8x32xf32>
    %364 = math.tanh %363 : vector<8x32xf32>
    %365 = arith.mulf %355, %364 : vector<8x32xf32>
    %366 = vector.extract_strided_slice %202 {offsets = [56, 0], sizes = [8, 128], strides = [1, 1]} : vector<64x128xf32> to vector<8x128xf32>
    %367 = arith.truncf %365 : vector<8x32xf32> to vector<8x32xbf16>
    %c0_117 = arith.constant 0 : index
    %c0_118 = arith.constant 0 : index
    %368 = vector.load %arg4[%c0_117, %c0_118] : memref<32x128xbf16, #tpu.memory_space<vmem>>, vector<32x128xbf16>
    %cst_119 = arith.constant dense<0.000000e+00> : vector<8x128xf32>
    %369 = tpu.matmul %367, %368, %cst_119 {dimension_numbers = #tpu.dot_dimension_numbers<[1], [0], [0], [1], [0, 0, 1, 1], [], []>} : vector<8x32xbf16>, vector<32x128xbf16>, vector<8x128xf32> -> vector<8x128xf32>
    %370 = arith.addf %366, %369 : vector<8x128xf32>
    %371 = arith.negf %370 : vector<8x128xf32>
    %372 = math.exp %371 : vector<8x128xf32>
    %cst_120 = arith.constant 1.000000e+00 : f32
    %373 = vector.broadcast %cst_120 : f32 to vector<8x128xf32>
    %374 = arith.addf %373, %372 : vector<8x128xf32>
    %375 = arith.divf %373, %374 : vector<8x128xf32>
    %376 = vector.extract_strided_slice %375 {offsets = [0, 0], sizes = [8, 32], strides = [1, 1]} : vector<8x128xf32> to vector<8x32xf32>
    %377 = vector.extract_strided_slice %375 {offsets = [0, 32], sizes = [8, 32], strides = [1, 1]} : vector<8x128xf32> to vector<8x32xf32>
    %378 = vector.extract_strided_slice %375 {offsets = [0, 96], sizes = [8, 32], strides = [1, 1]} : vector<8x128xf32> to vector<8x32xf32>
    %379 = vector.extract_strided_slice %375 {offsets = [0, 64], sizes = [8, 32], strides = [1, 1]} : vector<8x128xf32> to vector<8x32xf32>
    %cst_121 = arith.constant 2.000000e+00 : f32
    %380 = vector.broadcast %cst_121 : f32 to vector<8x32xf32>
    %381 = arith.mulf %380, %379 : vector<8x32xf32>
    %cst_122 = arith.constant 1.000000e+00 : f32
    %382 = vector.broadcast %cst_122 : f32 to vector<8x32xf32>
    %383 = arith.subf %381, %382 : vector<8x32xf32>
    %384 = arith.mulf %377, %363 : vector<8x32xf32>
    %385 = arith.mulf %376, %383 : vector<8x32xf32>
    %386 = arith.addf %384, %385 : vector<8x32xf32>
    %387 = math.tanh %386 : vector<8x32xf32>
    %388 = arith.mulf %378, %387 : vector<8x32xf32>
    %389 = tpu.concatenate %227, %250, %273, %296, %319, %342, %365, %388 in 0 : vector<8x32xf32>, vector<8x32xf32>, vector<8x32xf32>, vector<8x32xf32>, vector<8x32xf32>, vector<8x32xf32>, vector<8x32xf32>, vector<8x32xf32> -> vector<64x32xf32>
    %390 = vector.shape_cast %389 : vector<64x32xf32> to vector<8x8x32xf32>
    %c0_123 = arith.constant 0 : index
    %c0_124 = arith.constant 0 : index
    %c32 = arith.constant 32 : index
    %391 = vector.load %arg5[%c0_123, %c0_124, %c32] : memref<8x8x64xf32, #tpu.memory_space<vmem>>, vector<8x8x32xf32>
    tpu.vector_store %arg5[%c0_123, %c0_124, %c32], %390 {strides = array<i32>} : memref<8x8x64xf32, #tpu.memory_space<vmem>>, vector<8x8x32xf32>,
    return
  }
}

</mosaic_0001>

<llo_original>
// kernel: stack_rnn_forward.1
$region0: #{stack_rnn_forward.1}
  #allocation0 [shape = 'u32[]', space=smem, size = 0x4, offset = 0x4, fixed_abs, tag = 'smem constant byte address 0x4 - core index']
  #allocation1 [shape = 'u32[144,128]{1,0:T(1,128)}', space=vmem, size = 0x12000, scoped, tag = 'internal scratch']
  %s0 = inlined_call_operand.vmem [shape: f32[8,8,128], index: 0, kind: input, shape index: {}]
  %s1 = inlined_call_operand.vmem [shape: bf16[32,128], index: 1, kind: input, shape index: {}]
  %s2 = inlined_call_operand.vmem [shape: f32[1,128], index: 2, kind: input, shape index: {}]
  %s3 = inlined_call_operand.vmem [shape: bf16[32,128], index: 3, kind: input, shape index: {}]
  %s4 = inlined_call_operand.vmem [shape: bf16[32,128], index: 4, kind: input, shape index: {}]
  %s5 = inlined_call_operand.vmem [shape: f32[8,8,64], index: 5, kind: output, shape index: {}]
  %s6 = sld [smem:[#allocation0]]
  $region30: #{stack_rnn_forward.1} parent=0
    _
  %s8 = ssub.s32 1, %s6
  %s9 = scalar_select 0, %s8, %s6
  // Predicated region
  $region2: #{stack_rnn_forward.1} parent=0 // pred_check
    _
  $region3: #{stack_rnn_forward.1} parent=0 // pred_check_branch
    %11 = sbr.rel (0) target = $region5
  $region4: #{stack_rnn_forward.1} parent=0 // pred_region
    _
  $region5: #{stack_rnn_forward.1} parent=0 // pred_fallthru
    _
  // Predicated region
  $region6: #{stack_rnn_forward.1} parent=0 // pred_check
    _
  $region7: #{stack_rnn_forward.1} parent=0 // pred_check_branch
    %13 = sbr.rel (0) target = $region9
  $region8: #{stack_rnn_forward.1} parent=0 // pred_region
    _
  $region9: #{stack_rnn_forward.1} parent=0 // pred_fallthru
    _
  // Predicated region
  $region10: #{stack_rnn_forward.1} parent=0 // pred_check
    _
  $region11: #{stack_rnn_forward.1} parent=0 // pred_check_branch
    %15 = sbr.rel (0) target = $region13
  $region12: #{stack_rnn_forward.1} parent=0 // pred_region
    _
  $region13: #{stack_rnn_forward.1} parent=0 // pred_fallthru
    _
  // Predicated region
  $region14: #{stack_rnn_forward.1} parent=0 // pred_check
    _
  $region15: #{stack_rnn_forward.1} parent=0 // pred_check_branch
    %17 = sbr.rel (0) target = $region17
  $region16: #{stack_rnn_forward.1} parent=0 // pred_region
    _
  $region17: #{stack_rnn_forward.1} parent=0 // pred_fallthru
    _
  // Predicated region
  $region18: #{stack_rnn_forward.1} parent=0 // pred_check
    _
  $region19: #{stack_rnn_forward.1} parent=0 // pred_check_branch
    %19 = sbr.rel (0) target = $region21
  $region20: #{stack_rnn_forward.1} parent=0 // pred_region
    _
  $region21: #{stack_rnn_forward.1} parent=0 // pred_fallthru
    _
  %v21 = vld [vmem:[%s0] sm:$0xff]
  %v22 = vld [vmem:[%s3] sm:$0xf]
  %v23 = vld [vmem:[%s3 + $0x4] sm:$0xf]
  %v24 = vld [vmem:[%s3 + $0x8] sm:$0xf]
  %v25 = vld [vmem:[%s3 + $0xc] sm:$0xf]
  %v30 = vunpack.c.l.b16 %v22
  %v31 = vunpack.c.l.b16 %v23
  %v32 = vunpack.c.l.b16 %v24
  %v33 = vunpack.c.l.b16 %v25
  %v34 = vpack.c.b16 %v31, %v30
  %v35 = vpack.c.b16 %v33, %v32
  %vm38 = vcmask 261120
  %v40 = vsel %vm38, 0, 0
  %42 = vmatprep.subr.bf16.mxu0 0
  %43 = vmatpush1.bf16.msra.mxu0 0
  %44 = vmatprep.subr.bf16.mxu0 0
  %45 = vmatpush1.bf16.msra.mxu0 0
  %46 = vmatprep.subr.bf16.mxu0 0
  %47 = vmatpush1.bf16.msra.mxu0 0
  %48 = vmatprep.subr.bf16.mxu0 0
  %49 = vmatpush1.bf16.msra.mxu0 0
  %50 = vmatprep.subr.bf16.mxu0 0
  %51 = vmatpush1.bf16.msra.mxu0 0
  %52 = vmatprep.subr.bf16.mxu0 0
  %53 = vmatpush1.bf16.msra.mxu0 0
  %54 = vmatprep.subr.bf16.mxu0 0
  %55 = vmatpush1.bf16.msra.mxu0 %v35
  %56 = vmatprep.subr.bf16.mxu0 0
  %57 = vmatpush1.bf16.msra.mxu0 %v34
  %58 = vmatprep.subr.bf16.mxu0 0
  %59 = vmatpush2.bf16.msra.mxu0 0
  %60 = vmatprep.subr.bf16.mxu0 0
  %61 = vmatpush2.bf16.msra.mxu0 0
  %62 = vmatprep.subr.bf16.mxu0 0
  %63 = vmatpush2.bf16.msra.mxu0 0
  %64 = vmatprep.subr.bf16.mxu0 0
  %65 = vmatpush2.bf16.msra.mxu0 0
  %66 = vmatprep.subr.bf16.mxu0 0
  %67 = vmatpush2.bf16.msra.mxu0 0
  %68 = vmatprep.subr.bf16.mxu0 0
  %69 = vmatpush2.bf16.msra.mxu0 0
  %70 = vmatprep.subr.bf16.mxu0 0
  %71 = vmatpush2.bf16.msra.mxu0 0
  %72 = vmatprep.subr.bf16.mxu0 0
  %73 = vmatpush2.bf16.msra.mxu0 0
  %74 = vmatprep.mubr.bf16.mxu0 0
  %75 = vmatmul.mubr.bf16.gmra.mxu0 %v40
  %v76 = vpop.f32.mrf.mxu0
  %v77 = vadd.f32 0.0, %v76
  %v78 = vpop.f32.mrf.mxu0
  %v79 = vpop.f32.mrf.mxu0
  %v80 = vpop.f32.mrf.mxu0
  %81 = vdwg.mxu0
  %v82 = vadd.f32 %v21, %v77
  %v83 = vxor.u32 %v82, 2147483648
  %v84 = vmul.f32 %v83, 1.442695
  %v85 = vpow.pop %v84
  %v86 = vadd.f32 %v85, 1.0
  %v87 = vrcp.pop %v86
  %v88 = vmul.f32 1.0, %v87
  %v89 = vmul.f32 %v88, 2.0
  %v90 = vsub.f32 %v89, 1.0
  %v91 = vmul.f32 %v88, 0.0
  %93 = vrot.lane.b32.xlu0 %v90, 64
  %v94 = vpop.permute.xlu0 %93
  %v96 = vmul.f32 %v88, %v94
  %98 = vrot.lane.b32.xlu0 %v96, 32
  %v99 = vpop.permute.xlu0 %98
  %v101 = vadd.f32 %v91, %v99
  %v102 = vtanh.pop %v101
  %104 = vrot.lane.b32.xlu0 %v102, 64
  %v105 = vpop.permute.xlu0 %104
  %v107 = vmul.f32 %v88, %v105
  %s108 = scalar_lea.vmem %s0, 8
  %v109 = vld [vmem:[%s108] sm:$0xff]
  %v110 = vpack.c.bf16 %v107, %v107
  %112 = vrot.lane.b32.xlu0 %v110, 32
  %v113 = vpop.permute.xlu0 %112
  %v115 = vsel %vm38, %v113, 0
  %117 = vmatprep.subr.bf16.mxu0 0
  %118 = vmatpush1.bf16.msra.mxu0 0
  %119 = vmatprep.subr.bf16.mxu0 0
  %120 = vmatpush1.bf16.msra.mxu0 0
  %121 = vmatprep.subr.bf16.mxu0 0
  %122 = vmatpush1.bf16.msra.mxu0 0
  %123 = vmatprep.subr.bf16.mxu0 0
  %124 = vmatpush1.bf16.msra.mxu0 0
  %125 = vmatprep.subr.bf16.mxu0 0
  %126 = vmatpush1.bf16.msra.mxu0 0
  %127 = vmatprep.subr.bf16.mxu0 0
  %128 = vmatpush1.bf16.msra.mxu0 0
  %129 = vmatprep.subr.bf16.mxu0 0
  %130 = vmatpush1.bf16.msra.mxu0 %v35
  %131 = vmatprep.subr.bf16.mxu0 0
  %132 = vmatpush1.bf16.msra.mxu0 %v34
  %133 = vmatprep.subr.bf16.mxu0 0
  %134 = vmatpush2.bf16.msra.mxu0 0
  %135 = vmatprep.subr.bf16.mxu0 0
  %136 = vmatpush2.bf16.msra.mxu0 0
  %137 = vmatprep.subr.bf16.mxu0 0
  %138 = vmatpush2.bf16.msra.mxu0 0
  %139 = vmatprep.subr.bf16.mxu0 0
  %140 = vmatpush2.bf16.msra.mxu0 0
  %141 = vmatprep.subr.bf16.mxu0 0
  %142 = vmatpush2.bf16.msra.mxu0 0
  %143 = vmatprep.subr.bf16.mxu0 0
  %144 = vmatpush2.bf16.msra.mxu0 0
  %145 = vmatprep.subr.bf16.mxu0 0
  %146 = vmatpush2.bf16.msra.mxu0 0
  %147 = vmatprep.subr.bf16.mxu0 0
  %148 = vmatpush2.bf16.msra.mxu0 0
  %149 = vmatprep.mubr.bf16.mxu0 0
  %150 = vmatmul.mubr.bf16.gmra.mxu0 %v115
  %v151 = vpop.f32.mrf.mxu0
  %v152 = vadd.f32 0.0, %v151
  %v153 = vpop.f32.mrf.mxu0
  %v154 = vpop.f32.mrf.mxu0
  %v155 = vpop.f32.mrf.mxu0
  %156 = vdwg.mxu0
  %v157 = vadd.f32 %v109, %v152
  %v158 = vxor.u32 %v157, 2147483648
  %v159 = vmul.f32 %v158, 1.442695
  %v160 = vpow.pop %v159
  %v161 = vadd.f32 %v160, 1.0
  %v162 = vrcp.pop %v161
  %v163 = vmul.f32 1.0, %v162
  %v164 = vmul.f32 %v163, 2.0
  %v165 = vsub.f32 %v164, 1.0
  %v166 = vmul.f32 %v163, %v101
  %168 = vrot.lane.b32.xlu0 %v165, 64
  %v169 = vpop.permute.xlu0 %168
  %v171 = vmul.f32 %v163, %v169
  %173 = vrot.lane.b32.xlu0 %v171, 32
  %v174 = vpop.permute.xlu0 %173
  %v176 = vadd.f32 %v166, %v174
  %v177 = vtanh.pop %v176
  %179 = vrot.lane.b32.xlu0 %v177, 64
  %v180 = vpop.permute.xlu0 %179
  %v182 = vmul.f32 %v163, %v180
  %s183 = scalar_lea.vmem %s0, 16
  %v184 = vld [vmem:[%s183] sm:$0xff]
  %v185 = vpack.c.bf16 %v182, %v182
  %187 = vrot.lane.b32.xlu0 %v185, 32
  %v188 = vpop.permute.xlu0 %187
  %v190 = vsel %vm38, %v188, 0
  %192 = vmatprep.subr.bf16.mxu0 0
  %193 = vmatpush1.bf16.msra.mxu0 0
  %194 = vmatprep.subr.bf16.mxu0 0
  %195 = vmatpush1.bf16.msra.mxu0 0
  %196 = vmatprep.subr.bf16.mxu0 0
  %197 = vmatpush1.bf16.msra.mxu0 0
  %198 = vmatprep.subr.bf16.mxu0 0
  %199 = vmatpush1.bf16.msra.mxu0 0
  %200 = vmatprep.subr.bf16.mxu0 0
  %201 = vmatpush1.bf16.msra.mxu0 0
  %202 = vmatprep.subr.bf16.mxu0 0
  %203 = vmatpush1.bf16.msra.mxu0 0
  %204 = vmatprep.subr.bf16.mxu0 0
  %205 = vmatpush1.bf16.msra.mxu0 %v35
  %206 = vmatprep.subr.bf16.mxu0 0
  %207 = vmatpush1.bf16.msra.mxu0 %v34
  %208 = vmatprep.subr.bf16.mxu0 0
  %209 = vmatpush2.bf16.msra.mxu0 0
  %210 = vmatprep.subr.bf16.mxu0 0
  %211 = vmatpush2.bf16.msra.mxu0 0
  %212 = vmatprep.subr.bf16.mxu0 0
  %213 = vmatpush2.bf16.msra.mxu0 0
  %214 = vmatprep.subr.bf16.mxu0 0
  %215 = vmatpush2.bf16.msra.mxu0 0
  %216 = vmatprep.subr.bf16.mxu0 0
  %217 = vmatpush2.bf16.msra.mxu0 0
  %218 = vmatprep.subr.bf16.mxu0 0
  %219 = vmatpush2.bf16.msra.mxu0 0
  %220 = vmatprep.subr.bf16.mxu0 0
  %221 = vmatpush2.bf16.msra.mxu0 0
  %222 = vmatprep.subr.bf16.mxu0 0
  %223 = vmatpush2.bf16.msra.mxu0 0
  %224 = vmatprep.mubr.bf16.mxu0 0
  %225 = vmatmul.mubr.bf16.gmra.mxu0 %v190
  %v226 = vpop.f32.mrf.mxu0
  %v227 = vadd.f32 0.0, %v226
  %v228 = vpop.f32.mrf.mxu0
  %v229 = vpop.f32.mrf.mxu0
  %v230 = vpop.f32.mrf.mxu0
  %231 = vdwg.mxu0
  %v232 = vadd.f32 %v184, %v227
  %v233 = vxor.u32 %v232, 2147483648
  %v234 = vmul.f32 %v233, 1.442695
  %v235 = vpow.pop %v234
  %v236 = vadd.f32 %v235, 1.0
  %v237 = vrcp.pop %v236
  %v238 = vmul.f32 1.0, %v237
  %v239 = vmul.f32 %v238, 2.0
  %v240 = vsub.f32 %v239, 1.0
  %v241 = vmul.f32 %v238, %v176
  %243 = vrot.lane.b32.xlu0 %v240, 64
  %v244 = vpop.permute.xlu0 %243
  %v246 = vmul.f32 %v238, %v244
  %248 = vrot.lane.b32.xlu0 %v246, 32
  %v249 = vpop.permute.xlu0 %248
  %v251 = vadd.f32 %v241, %v249
  %v252 = vtanh.pop %v251
  %254 = vrot.lane.b32.xlu0 %v252, 64
  %v255 = vpop.permute.xlu0 %254
  %v257 = vmul.f32 %v238, %v255
  %s258 = scalar_lea.vmem %s0, 24
  %v259 = vld [vmem:[%s258] sm:$0xff]
  %v260 = vpack.c.bf16 %v257, %v257
  %262 = vrot.lane.b32.xlu0 %v260, 32
  %v263 = vpop.permute.xlu0 %262
  %v265 = vsel %vm38, %v263, 0
  %267 = vmatprep.subr.bf16.mxu0 0
  %268 = vmatpush1.bf16.msra.mxu0 0
  %269 = vmatprep.subr.bf16.mxu0 0
  %270 = vmatpush1.bf16.msra.mxu0 0
  %271 = vmatprep.subr.bf16.mxu0 0
  %272 = vmatpush1.bf16.msra.mxu0 0
  %273 = vmatprep.subr.bf16.mxu0 0
  %274 = vmatpush1.bf16.msra.mxu0 0
  %275 = vmatprep.subr.bf16.mxu0 0
  %276 = vmatpush1.bf16.msra.mxu0 0
  %277 = vmatprep.subr.bf16.mxu0 0
  %278 = vmatpush1.bf16.msra.mxu0 0
  %279 = vmatprep.subr.bf16.mxu0 0
  %280 = vmatpush1.bf16.msra.mxu0 %v35
  %281 = vmatprep.subr.bf16.mxu0 0
  %282 = vmatpush1.bf16.msra.mxu0 %v34
  %283 = vmatprep.subr.bf16.mxu0 0
  %284 = vmatpush2.bf16.msra.mxu0 0
  %285 = vmatprep.subr.bf16.mxu0 0
  %286 = vmatpush2.bf16.msra.mxu0 0
  %287 = vmatprep.subr.bf16.mxu0 0
  %288 = vmatpush2.bf16.msra.mxu0 0
  %289 = vmatprep.subr.bf16.mxu0 0
  %290 = vmatpush2.bf16.msra.mxu0 0
  %291 = vmatprep.subr.bf16.mxu0 0
  %292 = vmatpush2.bf16.msra.mxu0 0
  %293 = vmatprep.subr.bf16.mxu0 0
  %294 = vmatpush2.bf16.msra.mxu0 0
  %295 = vmatprep.subr.bf16.mxu0 0
  %296 = vmatpush2.bf16.msra.mxu0 0
  %297 = vmatprep.subr.bf16.mxu0 0
  %298 = vmatpush2.bf16.msra.mxu0 0
  %299 = vmatprep.mubr.bf16.mxu0 0
  %300 = vmatmul.mubr.bf16.gmra.mxu0 %v265
  %v301 = vpop.f32.mrf.mxu0
  %v302 = vadd.f32 0.0, %v301
  %v303 = vpop.f32.mrf.mxu0
  %v304 = vpop.f32.mrf.mxu0
  %v305 = vpop.f32.mrf.mxu0
  %306 = vdwg.mxu0
  %v307 = vadd.f32 %v259, %v302
  %v308 = vxor.u32 %v307, 2147483648
  %v309 = vmul.f32 %v308, 1.442695
  %v310 = vpow.pop %v309
  %v311 = vadd.f32 %v310, 1.0
  %v312 = vrcp.pop %v311
  %v313 = vmul.f32 1.0, %v312
  %v314 = vmul.f32 %v313, 2.0
  %v315 = vsub.f32 %v314, 1.0
  %v316 = vmul.f32 %v313, %v251
  %318 = vrot.lane.b32.xlu0 %v315, 64
  %v319 = vpop.permute.xlu0 %318
  %v321 = vmul.f32 %v313, %v319
  %323 = vrot.lane.b32.xlu0 %v321, 32
  %v324 = vpop.permute.xlu0 %323
  %v326 = vadd.f32 %v316, %v324
  %v327 = vtanh.pop %v326
  %329 = vrot.lane.b32.xlu0 %v327, 64
  %v330 = vpop.permute.xlu0 %329
  %v332 = vmul.f32 %v313, %v330
  %s333 = scalar_lea.vmem %s0, 32
  %v334 = vld [vmem:[%s333] sm:$0xff]
  %v335 = vpack.c.bf16 %v332, %v332
  %337 = vrot.lane.b32.xlu0 %v335, 32
  %v338 = vpop.permute.xlu0 %337
  %v340 = vsel %vm38, %v338, 0
  %342 = vmatprep.subr.bf16.mxu0 0
  %343 = vmatpush1.bf16.msra.mxu0 0
  %344 = vmatprep.subr.bf16.mxu0 0
  %345 = vmatpush1.bf16.msra.mxu0 0
  %346 = vmatprep.subr.bf16.mxu0 0
  %347 = vmatpush1.bf16.msra.mxu0 0
  %348 = vmatprep.subr.bf16.mxu0 0
  %349 = vmatpush1.bf16.msra.mxu0 0
  %350 = vmatprep.subr.bf16.mxu0 0
  %351 = vmatpush1.bf16.msra.mxu0 0
  %352 = vmatprep.subr.bf16.mxu0 0
  %353 = vmatpush1.bf16.msra.mxu0 0
  %354 = vmatprep.subr.bf16.mxu0 0
  %355 = vmatpush1.bf16.msra.mxu0 %v35
  %356 = vmatprep.subr.bf16.mxu0 0
  %357 = vmatpush1.bf16.msra.mxu0 %v34
  %358 = vmatprep.subr.bf16.mxu0 0
  %359 = vmatpush2.bf16.msra.mxu0 0
  %360 = vmatprep.subr.bf16.mxu0 0
  %361 = vmatpush2.bf16.msra.mxu0 0
  %362 = vmatprep.subr.bf16.mxu0 0
  %363 = vmatpush2.bf16.msra.mxu0 0
  %364 = vmatprep.subr.bf16.mxu0 0
  %365 = vmatpush2.bf16.msra.mxu0 0
  %366 = vmatprep.subr.bf16.mxu0 0
  %367 = vmatpush2.bf16.msra.mxu0 0
  %368 = vmatprep.subr.bf16.mxu0 0
  %369 = vmatpush2.bf16.msra.mxu0 0
  %370 = vmatprep.subr.bf16.mxu0 0
  %371 = vmatpush2.bf16.msra.mxu0 0
  %372 = vmatprep.subr.bf16.mxu0 0
  %373 = vmatpush2.bf16.msra.mxu0 0
  %374 = vmatprep.mubr.bf16.mxu0 0
  %375 = vmatmul.mubr.bf16.gmra.mxu0 %v340
  %v376 = vpop.f32.mrf.mxu0
  %v377 = vadd.f32 0.0, %v376
  %v378 = vpop.f32.mrf.mxu0
  %v379 = vpop.f32.mrf.mxu0
  %v380 = vpop.f32.mrf.mxu0
  %381 = vdwg.mxu0
  %v382 = vadd.f32 %v334, %v377
  %v383 = vxor.u32 %v382, 2147483648
  %v384 = vmul.f32 %v383, 1.442695
  %v385 = vpow.pop %v384
  %v386 = vadd.f32 %v385, 1.0
  %v387 = vrcp.pop %v386
  %v388 = vmul.f32 1.0, %v387
  %v389 = vmul.f32 %v388, 2.0
  %v390 = vsub.f32 %v389, 1.0
  %v391 = vmul.f32 %v388, %v326
  %393 = vrot.lane.b32.xlu0 %v390, 64
  %v394 = vpop.permute.xlu0 %393
  %v396 = vmul.f32 %v388, %v394
  %398 = vrot.lane.b32.xlu0 %v396, 32
  %v399 = vpop.permute.xlu0 %398
  %v401 = vadd.f32 %v391, %v399
  %v402 = vtanh.pop %v401
  %404 = vrot.lane.b32.xlu0 %v402, 64
  %v405 = vpop.permute.xlu0 %404
  %v407 = vmul.f32 %v388, %v405
  %s408 = scalar_lea.vmem %s0, 40
  %v409 = vld [vmem:[%s408] sm:$0xff]
  %v410 = vpack.c.bf16 %v407, %v407
  %412 = vrot.lane.b32.xlu0 %v410, 32
  %v413 = vpop.permute.xlu0 %412
  %v415 = vsel %vm38, %v413, 0
  %417 = vmatprep.subr.bf16.mxu0 0
  %418 = vmatpush1.bf16.msra.mxu0 0
  %419 = vmatprep.subr.bf16.mxu0 0
  %420 = vmatpush1.bf16.msra.mxu0 0
  %421 = vmatprep.subr.bf16.mxu0 0
  %422 = vmatpush1.bf16.msra.mxu0 0
  %423 = vmatprep.subr.bf16.mxu0 0
  %424 = vmatpush1.bf16.msra.mxu0 0
  %425 = vmatprep.subr.bf16.mxu0 0
  %426 = vmatpush1.bf16.msra.mxu0 0
  %427 = vmatprep.subr.bf16.mxu0 0
  %428 = vmatpush1.bf16.msra.mxu0 0
  %429 = vmatprep.subr.bf16.mxu0 0
  %430 = vmatpush1.bf16.msra.mxu0 %v35
  %431 = vmatprep.subr.bf16.mxu0 0
  %432 = vmatpush1.bf16.msra.mxu0 %v34
  %433 = vmatprep.subr.bf16.mxu0 0
  %434 = vmatpush2.bf16.msra.mxu0 0
  %435 = vmatprep.subr.bf16.mxu0 0
  %436 = vmatpush2.bf16.msra.mxu0 0
  %437 = vmatprep.subr.bf16.mxu0 0
  %438 = vmatpush2.bf16.msra.mxu0 0
  %439 = vmatprep.subr.bf16.mxu0 0
  %440 = vmatpush2.bf16.msra.mxu0 0
  %441 = vmatprep.subr.bf16.mxu0 0
  %442 = vmatpush2.bf16.msra.mxu0 0
  %443 = vmatprep.subr.bf16.mxu0 0
  %444 = vmatpush2.bf16.msra.mxu0 0
  %445 = vmatprep.subr.bf16.mxu0 0
  %446 = vmatpush2.bf16.msra.mxu0 0
  %447 = vmatprep.subr.bf16.mxu0 0
  %448 = vmatpush2.bf16.msra.mxu0 0
  %449 = vmatprep.mubr.bf16.mxu0 0
  %450 = vmatmul.mubr.bf16.gmra.mxu0 %v415
  %v451 = vpop.f32.mrf.mxu0
  %v452 = vadd.f32 0.0, %v451
  %v453 = vpop.f32.mrf.mxu0
  %v454 = vpop.f32.mrf.mxu0
  %v455 = vpop.f32.mrf.mxu0
  %456 = vdwg.mxu0
  %v457 = vadd.f32 %v409, %v452
  %v458 = vxor.u32 %v457, 2147483648
  %v459 = vmul.f32 %v458, 1.442695
  %v460 = vpow.pop %v459
  %v461 = vadd.f32 %v460, 1.0
  %v462 = vrcp.pop %v461
  %v463 = vmul.f32 1.0, %v462
  %v464 = vmul.f32 %v463, 2.0
  %v465 = vsub.f32 %v464, 1.0
  %v466 = vmul.f32 %v463, %v401
  %468 = vrot.lane.b32.xlu0 %v465, 64
  %v469 = vpop.permute.xlu0 %468
  %v471 = vmul.f32 %v463, %v469
  %473 = vrot.lane.b32.xlu0 %v471, 32
  %v474 = vpop.permute.xlu0 %473
  %v476 = vadd.f32 %v466, %v474
  %v477 = vtanh.pop %v476
  %479 = vrot.lane.b32.xlu0 %v477, 64
  %v480 = vpop.permute.xlu0 %479
  %v482 = vmul.f32 %v463, %v480
  %s483 = scalar_lea.vmem %s0, 48
  %v484 = vld [vmem:[%s483] sm:$0xff]
  %v485 = vpack.c.bf16 %v482, %v482
  %487 = vrot.lane.b32.xlu0 %v485, 32
  %v488 = vpop.permute.xlu0 %487
  %v490 = vsel %vm38, %v488, 0
  %492 = vmatprep.subr.bf16.mxu0 0
  %493 = vmatpush1.bf16.msra.mxu0 0
  %494 = vmatprep.subr.bf16.mxu0 0
  %495 = vmatpush1.bf16.msra.mxu0 0
  %496 = vmatprep.subr.bf16.mxu0 0
  %497 = vmatpush1.bf16.msra.mxu0 0
  %498 = vmatprep.subr.bf16.mxu0 0
  %499 = vmatpush1.bf16.msra.mxu0 0
  %500 = vmatprep.subr.bf16.mxu0 0
  %501 = vmatpush1.bf16.msra.mxu0 0
  %502 = vmatprep.subr.bf16.mxu0 0
  %503 = vmatpush1.bf16.msra.mxu0 0
  %504 = vmatprep.subr.bf16.mxu0 0
  %505 = vmatpush1.bf16.msra.mxu0 %v35
  %506 = vmatprep.subr.bf16.mxu0 0
  %507 = vmatpush1.bf16.msra.mxu0 %v34
  %508 = vmatprep.subr.bf16.mxu0 0
  %509 = vmatpush2.bf16.msra.mxu0 0
  %510 = vmatprep.subr.bf16.mxu0 0
  %511 = vmatpush2.bf16.msra.mxu0 0
  %512 = vmatprep.subr.bf16.mxu0 0
  %513 = vmatpush2.bf16.msra.mxu0 0
  %514 = vmatprep.subr.bf16.mxu0 0
  %515 = vmatpush2.bf16.msra.mxu0 0
  %516 = vmatprep.subr.bf16.mxu0 0
  %517 = vmatpush2.bf16.msra.mxu0 0
  %518 = vmatprep.subr.bf16.mxu0 0
  %519 = vmatpush2.bf16.msra.mxu0 0
  %520 = vmatprep.subr.bf16.mxu0 0
  %521 = vmatpush2.bf16.msra.mxu0 0
  %522 = vmatprep.subr.bf16.mxu0 0
  %523 = vmatpush2.bf16.msra.mxu0 0
  %524 = vmatprep.mubr.bf16.mxu0 0
  %525 = vmatmul.mubr.bf16.gmra.mxu0 %v490
  %v526 = vpop.f32.mrf.mxu0
  %v527 = vadd.f32 0.0, %v526
  %v528 = vpop.f32.mrf.mxu0
  %v529 = vpop.f32.mrf.mxu0
  %v530 = vpop.f32.mrf.mxu0
  %531 = vdwg.mxu0
  %v532 = vadd.f32 %v484, %v527
  %v533 = vxor.u32 %v532, 2147483648
  %v534 = vmul.f32 %v533, 1.442695
  %v535 = vpow.pop %v534
  %v536 = vadd.f32 %v535, 1.0
  %v537 = vrcp.pop %v536
  %v538 = vmul.f32 1.0, %v537
  %v539 = vmul.f32 %v538, 2.0
  %v540 = vsub.f32 %v539, 1.0
  %v541 = vmul.f32 %v538, %v476
  %543 = vrot.lane.b32.xlu0 %v540, 64
  %v544 = vpop.permute.xlu0 %543
  %v546 = vmul.f32 %v538, %v544
  %548 = vrot.lane.b32.xlu0 %v546, 32
  %v549 = vpop.permute.xlu0 %548
  %v551 = vadd.f32 %v541, %v549
  %v552 = vtanh.pop %v551
  %554 = vrot.lane.b32.xlu0 %v552, 64
  %v555 = vpop.permute.xlu0 %554
  %v557 = vmul.f32 %v538, %v555
  %s558 = scalar_lea.vmem %s0, 56
  %v559 = vld [vmem:[%s558] sm:$0xff]
  %v560 = vpack.c.bf16 %v557, %v557
  %562 = vrot.lane.b32.xlu0 %v560, 32
  %v563 = vpop.permute.xlu0 %562
  %v565 = vsel %vm38, %v563, 0
  %567 = vmatprep.subr.bf16.mxu0 0
  %568 = vmatpush1.bf16.msra.mxu0 0
  %569 = vmatprep.subr.bf16.mxu0 0
  %570 = vmatpush1.bf16.msra.mxu0 0
  %571 = vmatprep.subr.bf16.mxu0 0
  %572 = vmatpush1.bf16.msra.mxu0 0
  %573 = vmatprep.subr.bf16.mxu0 0
  %574 = vmatpush1.bf16.msra.mxu0 0
  %575 = vmatprep.subr.bf16.mxu0 0
  %576 = vmatpush1.bf16.msra.mxu0 0
  %577 = vmatprep.subr.bf16.mxu0 0
  %578 = vmatpush1.bf16.msra.mxu0 0
  %579 = vmatprep.subr.bf16.mxu0 0
  %580 = vmatpush1.bf16.msra.mxu0 %v35
  %581 = vmatprep.subr.bf16.mxu0 0
  %582 = vmatpush1.bf16.msra.mxu0 %v34
  %583 = vmatprep.subr.bf16.mxu0 0
  %584 = vmatpush2.bf16.msra.mxu0 0
  %585 = vmatprep.subr.bf16.mxu0 0
  %586 = vmatpush2.bf16.msra.mxu0 0
  %587 = vmatprep.subr.bf16.mxu0 0
  %588 = vmatpush2.bf16.msra.mxu0 0
  %589 = vmatprep.subr.bf16.mxu0 0
  %590 = vmatpush2.bf16.msra.mxu0 0
  %591 = vmatprep.subr.bf16.mxu0 0
  %592 = vmatpush2.bf16.msra.mxu0 0
  %593 = vmatprep.subr.bf16.mxu0 0
  %594 = vmatpush2.bf16.msra.mxu0 0
  %595 = vmatprep.subr.bf16.mxu0 0
  %596 = vmatpush2.bf16.msra.mxu0 0
  %597 = vmatprep.subr.bf16.mxu0 0
  %598 = vmatpush2.bf16.msra.mxu0 0
  %599 = vmatprep.mubr.bf16.mxu0 0
  %600 = vmatmul.mubr.bf16.gmra.mxu0 %v565
  %v601 = vpop.f32.mrf.mxu0
  %v602 = vadd.f32 0.0, %v601
  %v603 = vpop.f32.mrf.mxu0
  %v604 = vpop.f32.mrf.mxu0
  %v605 = vpop.f32.mrf.mxu0
  %606 = vdwg.mxu0
  %v607 = vadd.f32 %v559, %v602
  %v608 = vxor.u32 %v607, 2147483648
  %v609 = vmul.f32 %v608, 1.442695
  %v610 = vpow.pop %v609
  %v611 = vadd.f32 %v610, 1.0
  %v612 = vrcp.pop %v611
  %v613 = vmul.f32 1.0, %v612
  %v614 = vmul.f32 %v613, 2.0
  %v615 = vsub.f32 %v614, 1.0
  %v616 = vmul.f32 %v613, %v551
  %618 = vrot.lane.b32.xlu0 %v615, 64
  %v619 = vpop.permute.xlu0 %618
  %v621 = vmul.f32 %v613, %v619
  %623 = vrot.lane.b32.xlu0 %v621, 32
  %v624 = vpop.permute.xlu0 %623
  %v626 = vadd.f32 %v616, %v624
  %v627 = vtanh.pop %v626
  %629 = vrot.lane.b32.xlu0 %v627, 64
  %v630 = vpop.permute.xlu0 %629
  %v632 = vmul.f32 %v613, %v630
  %641 = vrot.lane.b32.xlu0 %v107, 32
  %v642 = vpop.permute.xlu0 %641
  %643 = vrot.lane.b32.xlu0 %v182, 32
  %v644 = vpop.permute.xlu0 %643
  %645 = vrot.lane.b32.xlu0 %v257, 32
  %v646 = vpop.permute.xlu0 %645
  %647 = vrot.lane.b32.xlu0 %v332, 32
  %v648 = vpop.permute.xlu0 %647
  %649 = vrot.lane.b32.xlu0 %v407, 32
  %v650 = vpop.permute.xlu0 %649
  %651 = vrot.lane.b32.xlu0 %v482, 32
  %v652 = vpop.permute.xlu0 %651
  %653 = vrot.lane.b32.xlu0 %v557, 32
  %v654 = vpop.permute.xlu0 %653
  %655 = vrot.lane.b32.xlu0 %v632, 32
  %v656 = vpop.permute.xlu0 %655
  %665 = vst.msk [vmem:[%s5] sm:$0xff] %vm38, %v642
  %666 = vst.msk [vmem:[%s5 + $0x8] sm:$0xff] %vm38, %v644
  %667 = vst.msk [vmem:[%s5 + $0x10] sm:$0xff] %vm38, %v646
  %668 = vst.msk [vmem:[%s5 + $0x18] sm:$0xff] %vm38, %v648
  %669 = vst.msk [vmem:[%s5 + $0x20] sm:$0xff] %vm38, %v650
  %670 = vst.msk [vmem:[%s5 + $0x28] sm:$0xff] %vm38, %v652
  %671 = vst.msk [vmem:[%s5 + $0x30] sm:$0xff] %vm38, %v654
  %672 = vst.msk [vmem:[%s5 + $0x38] sm:$0xff] %vm38, %v656
  %v673 = vpack.c.bf16 %v182, %v107
  %v674 = vpack.c.bf16 %v332, %v257
  %v675 = vpack.c.bf16 %v482, %v407
  %v676 = vpack.c.bf16 %v632, %v557
  %v677 = vld [vmem:[%s1] sm:$0xf]
  %v678 = vld [vmem:[%s1 + $0x4] sm:$0xf]
  %v679 = vld [vmem:[%s1 + $0x8] sm:$0xf]
  %v680 = vld [vmem:[%s1 + $0xc] sm:$0xf]
  %v681 = vld [vmem:[%s2] sm:$0x1]
  %v683 = vlaneseq
  %v684 = vshrl.u32 %v683, 7
  %v685 = vsub.s32 0, %v684
  %v686 = vrot.slane %v681, %v685
  %692 = vrot.lane.b32.xlu0 %v673, 32
  %v693 = vpop.permute.xlu0 %692
  %694 = vrot.lane.b32.xlu0 %v674, 32
  %v695 = vpop.permute.xlu0 %694
  %696 = vrot.lane.b32.xlu0 %v675, 32
  %v697 = vpop.permute.xlu0 %696
  %698 = vrot.lane.b32.xlu0 %v676, 32
  %v699 = vpop.permute.xlu0 %698
  %v704 = vunpack.c.l.b16 %v677
  %v705 = vunpack.c.l.b16 %v678
  %v706 = vunpack.c.l.b16 %v679
  %v707 = vunpack.c.l.b16 %v680
  %v708 = vpack.c.b16 %v705, %v704
  %v709 = vpack.c.b16 %v707, %v706
  %v713 = vsel %vm38, %v693, 0
  %v716 = vsel %vm38, %v695, 0
  %v719 = vsel %vm38, %v697, 0
  %v722 = vsel %vm38, %v699, 0
  %724 = vmatprep.subr.bf16.mxu0 0
  %725 = vmatpush1.bf16.msra.mxu0 0
  %726 = vmatprep.subr.bf16.mxu0 0
  %727 = vmatpush1.bf16.msra.mxu0 0
  %728 = vmatprep.subr.bf16.mxu0 0
  %729 = vmatpush1.bf16.msra.mxu0 0
  %730 = vmatprep.subr.bf16.mxu0 0
  %731 = vmatpush1.bf16.msra.mxu0 0
  %732 = vmatprep.subr.bf16.mxu0 0
  %733 = vmatpush1.bf16.msra.mxu0 0
  %734 = vmatprep.subr.bf16.mxu0 0
  %735 = vmatpush1.bf16.msra.mxu0 0
  %736 = vmatprep.subr.bf16.mxu0 0
  %737 = vmatpush1.bf16.msra.mxu0 %v709
  %738 = vmatprep.subr.bf16.mxu0 0
  %739 = vmatpush1.bf16.msra.mxu0 %v708
  %740 = vmatprep.subr.bf16.mxu0 0
  %741 = vmatpush2.bf16.msra.mxu0 0
  %742 = vmatprep.subr.bf16.mxu0 0
  %743 = vmatpush2.bf16.msra.mxu0 0
  %744 = vmatprep.subr.bf16.mxu0 0
  %745 = vmatpush2.bf16.msra.mxu0 0
  %746 = vmatprep.subr.bf16.mxu0 0
  %747 = vmatpush2.bf16.msra.mxu0 0
  %748 = vmatprep.subr.bf16.mxu0 0
  %749 = vmatpush2.bf16.msra.mxu0 0
  %750 = vmatprep.subr.bf16.mxu0 0
  %751 = vmatpush2.bf16.msra.mxu0 0
  %752 = vmatprep.subr.bf16.mxu0 0
  %753 = vmatpush2.bf16.msra.mxu0 0
  %754 = vmatprep.subr.bf16.mxu0 0
  %755 = vmatpush2.bf16.msra.mxu0 0
  %756 = vmatprep.mubr.bf16.mxu0 0
  %757 = vmatmul.mubr.bf16.gmra.mxu0 %v713
  %v758 = vpop.f32.mrf.mxu0
  %v759 = vadd.f32 %v686, %v758
  %v760 = vpop.f32.mrf.mxu0
  %v761 = vpop.f32.mrf.mxu0
  %v762 = vadd.f32 %v686, %v761
  %v763 = vpop.f32.mrf.mxu0
  %764 = vmatprep.mubr.bf16.mxu0 0
  %765 = vmatmul.mubr.bf16.gmra.mxu0 %v716
  %v766 = vpop.f32.mrf.mxu0
  %v767 = vadd.f32 %v686, %v766
  %v768 = vpop.f32.mrf.mxu0
  %v769 = vpop.f32.mrf.mxu0
  %v770 = vadd.f32 %v686, %v769
  %v771 = vpop.f32.mrf.mxu0
  %772 = vmatprep.mubr.bf16.mxu0 0
  %773 = vmatmul.mubr.bf16.gmra.mxu0 %v719
  %v774 = vpop.f32.mrf.mxu0
  %v775 = vadd.f32 %v686, %v774
  %v776 = vpop.f32.mrf.mxu0
  %v777 = vpop.f32.mrf.mxu0
  %v778 = vadd.f32 %v686, %v777
  %v779 = vpop.f32.mrf.mxu0
  %780 = vmatprep.mubr.bf16.mxu0 0
  %781 = vmatmul.mubr.bf16.gmra.mxu0 %v722
  %v782 = vpop.f32.mrf.mxu0
  %v783 = vadd.f32 %v686, %v782
  %v784 = vpop.f32.mrf.mxu0
  %v785 = vpop.f32.mrf.mxu0
  %v786 = vadd.f32 %v686, %v785
  %v787 = vpop.f32.mrf.mxu0
  %788 = vdwg.mxu0
  %v789 = vld [vmem:[%s4] sm:$0xf]
  %v790 = vld [vmem:[%s4 + $0x4] sm:$0xf]
  %v791 = vld [vmem:[%s4 + $0x8] sm:$0xf]
  %v792 = vld [vmem:[%s4 + $0xc] sm:$0xf]
  %v797 = vunpack.c.l.b16 %v789
  %v798 = vunpack.c.l.b16 %v790
  %v799 = vunpack.c.l.b16 %v791
  %v800 = vunpack.c.l.b16 %v792
  %v801 = vpack.c.b16 %v798, %v797
  %v802 = vpack.c.b16 %v800, %v799
  %805 = vmatprep.subr.bf16.mxu0 0
  %806 = vmatpush1.bf16.msra.mxu0 0
  %807 = vmatprep.subr.bf16.mxu0 0
  %808 = vmatpush1.bf16.msra.mxu0 0
  %809 = vmatprep.subr.bf16.mxu0 0
  %810 = vmatpush1.bf16.msra.mxu0 0
  %811 = vmatprep.subr.bf16.mxu0 0
  %812 = vmatpush1.bf16.msra.mxu0 0
  %813 = vmatprep.subr.bf16.mxu0 0
  %814 = vmatpush1.bf16.msra.mxu0 0
  %815 = vmatprep.subr.bf16.mxu0 0
  %816 = vmatpush1.bf16.msra.mxu0 0
  %817 = vmatprep.subr.bf16.mxu0 0
  %818 = vmatpush1.bf16.msra.mxu0 %v802
  %819 = vmatprep.subr.bf16.mxu0 0
  %820 = vmatpush1.bf16.msra.mxu0 %v801
  %821 = vmatprep.subr.bf16.mxu0 0
  %822 = vmatpush2.bf16.msra.mxu0 0
  %823 = vmatprep.subr.bf16.mxu0 0
  %824 = vmatpush2.bf16.msra.mxu0 0
  %825 = vmatprep.subr.bf16.mxu0 0
  %826 = vmatpush2.bf16.msra.mxu0 0
  %827 = vmatprep.subr.bf16.mxu0 0
  %828 = vmatpush2.bf16.msra.mxu0 0
  %829 = vmatprep.subr.bf16.mxu0 0
  %830 = vmatpush2.bf16.msra.mxu0 0
  %831 = vmatprep.subr.bf16.mxu0 0
  %832 = vmatpush2.bf16.msra.mxu0 0
  %833 = vmatprep.subr.bf16.mxu0 0
  %834 = vmatpush2.bf16.msra.mxu0 0
  %835 = vmatprep.subr.bf16.mxu0 0
  %836 = vmatpush2.bf16.msra.mxu0 0
  %837 = vmatprep.mubr.bf16.mxu0 0
  %838 = vmatmul.mubr.bf16.gmra.mxu0 %v40
  %v839 = vpop.f32.mrf.mxu0
  %v840 = vadd.f32 0.0, %v839
  %v841 = vpop.f32.mrf.mxu0
  %v842 = vpop.f32.mrf.mxu0
  %v843 = vpop.f32.mrf.mxu0
  %844 = vdwg.mxu0
  %v845 = vadd.f32 %v759, %v840
  %v846 = vxor.u32 %v845, 2147483648
  %v847 = vmul.f32 %v846, 1.442695
  %v848 = vpow.pop %v847
  %v849 = vadd.f32 %v848, 1.0
  %v850 = vrcp.pop %v849
  %v851 = vmul.f32 1.0, %v850
  %v852 = vmul.f32 %v851, 2.0
  %v853 = vsub.f32 %v852, 1.0
  %v854 = vmul.f32 %v851, 0.0
  %856 = vrot.lane.b32.xlu0 %v853, 64
  %v857 = vpop.permute.xlu0 %856
  %v859 = vmul.f32 %v851, %v857
  %861 = vrot.lane.b32.xlu0 %v859, 32
  %v862 = vpop.permute.xlu0 %861
  %v864 = vadd.f32 %v854, %v862
  %v865 = vtanh.pop %v864
  %867 = vrot.lane.b32.xlu0 %v865, 64
  %v868 = vpop.permute.xlu0 %867
  %v870 = vmul.f32 %v851, %v868
  %v871 = vpack.c.bf16 %v870, %v870
  %873 = vrot.lane.b32.xlu0 %v871, 32
  %v874 = vpop.permute.xlu0 %873
  %v876 = vsel %vm38, %v874, 0
  %878 = vmatprep.subr.bf16.mxu0 0
  %879 = vmatpush1.bf16.msra.mxu0 0
  %880 = vmatprep.subr.bf16.mxu0 0
  %881 = vmatpush1.bf16.msra.mxu0 0
  %882 = vmatprep.subr.bf16.mxu0 0
  %883 = vmatpush1.bf16.msra.mxu0 0
  %884 = vmatprep.subr.bf16.mxu0 0
  %885 = vmatpush1.bf16.msra.mxu0 0
  %886 = vmatprep.subr.bf16.mxu0 0
  %887 = vmatpush1.bf16.msra.mxu0 0
  %888 = vmatprep.subr.bf16.mxu0 0
  %889 = vmatpush1.bf16.msra.mxu0 0
  %890 = vmatprep.subr.bf16.mxu0 0
  %891 = vmatpush1.bf16.msra.mxu0 %v802
  %892 = vmatprep.subr.bf16.mxu0 0
  %893 = vmatpush1.bf16.msra.mxu0 %v801
  %894 = vmatprep.subr.bf16.mxu0 0
  %895 = vmatpush2.bf16.msra.mxu0 0
  %896 = vmatprep.subr.bf16.mxu0 0
  %897 = vmatpush2.bf16.msra.mxu0 0
  %898 = vmatprep.subr.bf16.mxu0 0
  %899 = vmatpush2.bf16.msra.mxu0 0
  %900 = vmatprep.subr.bf16.mxu0 0
  %901 = vmatpush2.bf16.msra.mxu0 0
  %902 = vmatprep.subr.bf16.mxu0 0
  %903 = vmatpush2.bf16.msra.mxu0 0
  %904 = vmatprep.subr.bf16.mxu0 0
  %905 = vmatpush2.bf16.msra.mxu0 0
  %906 = vmatprep.subr.bf16.mxu0 0
  %907 = vmatpush2.bf16.msra.mxu0 0
  %908 = vmatprep.subr.bf16.mxu0 0
  %909 = vmatpush2.bf16.msra.mxu0 0
  %910 = vmatprep.mubr.bf16.mxu0 0
  %911 = vmatmul.mubr.bf16.gmra.mxu0 %v876
  %v912 = vpop.f32.mrf.mxu0
  %v913 = vadd.f32 0.0, %v912
  %v914 = vpop.f32.mrf.mxu0
  %v915 = vpop.f32.mrf.mxu0
  %v916 = vpop.f32.mrf.mxu0
  %917 = vdwg.mxu0
  %v918 = vadd.f32 %v762, %v913
  %v919 = vxor.u32 %v918, 2147483648
  %v920 = vmul.f32 %v919, 1.442695
  %v921 = vpow.pop %v920
  %v922 = vadd.f32 %v921, 1.0
  %v923 = vrcp.pop %v922
  %v924 = vmul.f32 1.0, %v923
  %v925 = vmul.f32 %v924, 2.0
  %v926 = vsub.f32 %v925, 1.0
  %v927 = vmul.f32 %v924, %v864
  %929 = vrot.lane.b32.xlu0 %v926, 64
  %v930 = vpop.permute.xlu0 %929
  %v932 = vmul.f32 %v924, %v930
  %934 = vrot.lane.b32.xlu0 %v932, 32
  %v935 = vpop.permute.xlu0 %934
  %v937 = vadd.f32 %v927, %v935
  %v938 = vtanh.pop %v937
  %940 = vrot.lane.b32.xlu0 %v938, 64
  %v941 = vpop.permute.xlu0 %940
  %v943 = vmul.f32 %v924, %v941
  %v944 = vpack.c.bf16 %v943, %v943
  %946 = vrot.lane.b32.xlu0 %v944, 32
  %v947 = vpop.permute.xlu0 %946
  %v949 = vsel %vm38, %v947, 0
  %951 = vmatprep.subr.bf16.mxu0 0
  %952 = vmatpush1.bf16.msra.mxu0 0
  %953 = vmatprep.subr.bf16.mxu0 0
  %954 = vmatpush1.bf16.msra.mxu0 0
  %955 = vmatprep.subr.bf16.mxu0 0
  %956 = vmatpush1.bf16.msra.mxu0 0
  %957 = vmatprep.subr.bf16.mxu0 0
  %958 = vmatpush1.bf16.msra.mxu0 0
  %959 = vmatprep.subr.bf16.mxu0 0
  %960 = vmatpush1.bf16.msra.mxu0 0
  %961 = vmatprep.subr.bf16.mxu0 0
  %962 = vmatpush1.bf16.msra.mxu0 0
  %963 = vmatprep.subr.bf16.mxu0 0
  %964 = vmatpush1.bf16.msra.mxu0 %v802
  %965 = vmatprep.subr.bf16.mxu0 0
  %966 = vmatpush1.bf16.msra.mxu0 %v801
  %967 = vmatprep.subr.bf16.mxu0 0
  %968 = vmatpush2.bf16.msra.mxu0 0
  %969 = vmatprep.subr.bf16.mxu0 0
  %970 = vmatpush2.bf16.msra.mxu0 0
  %971 = vmatprep.subr.bf16.mxu0 0
  %972 = vmatpush2.bf16.msra.mxu0 0
  %973 = vmatprep.subr.bf16.mxu0 0
  %974 = vmatpush2.bf16.msra.mxu0 0
  %975 = vmatprep.subr.bf16.mxu0 0
  %976 = vmatpush2.bf16.msra.mxu0 0
  %977 = vmatprep.subr.bf16.mxu0 0
  %978 = vmatpush2.bf16.msra.mxu0 0
  %979 = vmatprep.subr.bf16.mxu0 0
  %980 = vmatpush2.bf16.msra.mxu0 0
  %981 = vmatprep.subr.bf16.mxu0 0
  %982 = vmatpush2.bf16.msra.mxu0 0
  %983 = vmatprep.mubr.bf16.mxu0 0
  %984 = vmatmul.mubr.bf16.gmra.mxu0 %v949
  %v985 = vpop.f32.mrf.mxu0
  %v986 = vadd.f32 0.0, %v985
  %v987 = vpop.f32.mrf.mxu0
  %v988 = vpop.f32.mrf.mxu0
  %v989 = vpop.f32.mrf.mxu0
  %990 = vdwg.mxu0
  %v991 = vadd.f32 %v767, %v986
  %v992 = vxor.u32 %v991, 2147483648
  %v993 = vmul.f32 %v992, 1.442695
  %v994 = vpow.pop %v993
  %v995 = vadd.f32 %v994, 1.0
  %v996 = vrcp.pop %v995
  %v997 = vmul.f32 1.0, %v996
  %v998 = vmul.f32 %v997, 2.0
  %v999 = vsub.f32 %v998, 1.0
  %v1000 = vmul.f32 %v997, %v937
  %1002 = vrot.lane.b32.xlu0 %v999, 64
  %v1003 = vpop.permute.xlu0 %1002
  %v1005 = vmul.f32 %v997, %v1003
  %1007 = vrot.lane.b32.xlu0 %v1005, 32
  %v1008 = vpop.permute.xlu0 %1007
  %v1010 = vadd.f32 %v1000, %v1008
  %v1011 = vtanh.pop %v1010
  %1013 = vrot.lane.b32.xlu0 %v1011, 64
  %v1014 = vpop.permute.xlu0 %1013
  %v1016 = vmul.f32 %v997, %v1014
  %v1017 = vpack.c.bf16 %v1016, %v1016
  %1019 = vrot.lane.b32.xlu0 %v1017, 32
  %v1020 = vpop.permute.xlu0 %1019
  %v1022 = vsel %vm38, %v1020, 0
  %1024 = vmatprep.subr.bf16.mxu0 0
  %1025 = vmatpush1.bf16.msra.mxu0 0
  %1026 = vmatprep.subr.bf16.mxu0 0
  %1027 = vmatpush1.bf16.msra.mxu0 0
  %1028 = vmatprep.subr.bf16.mxu0 0
  %1029 = vmatpush1.bf16.msra.mxu0 0
  %1030 = vmatprep.subr.bf16.mxu0 0
  %1031 = vmatpush1.bf16.msra.mxu0 0
  %1032 = vmatprep.subr.bf16.mxu0 0
  %1033 = vmatpush1.bf16.msra.mxu0 0
  %1034 = vmatprep.subr.bf16.mxu0 0
  %1035 = vmatpush1.bf16.msra.mxu0 0
  %1036 = vmatprep.subr.bf16.mxu0 0
  %1037 = vmatpush1.bf16.msra.mxu0 %v802
  %1038 = vmatprep.subr.bf16.mxu0 0
  %1039 = vmatpush1.bf16.msra.mxu0 %v801
  %1040 = vmatprep.subr.bf16.mxu0 0
  %1041 = vmatpush2.bf16.msra.mxu0 0
  %1042 = vmatprep.subr.bf16.mxu0 0
  %1043 = vmatpush2.bf16.msra.mxu0 0
  %1044 = vmatprep.subr.bf16.mxu0 0
  %1045 = vmatpush2.bf16.msra.mxu0 0
  %1046 = vmatprep.subr.bf16.mxu0 0
  %1047 = vmatpush2.bf16.msra.mxu0 0
  %1048 = vmatprep.subr.bf16.mxu0 0
  %1049 = vmatpush2.bf16.msra.mxu0 0
  %1050 = vmatprep.subr.bf16.mxu0 0
  %1051 = vmatpush2.bf16.msra.mxu0 0
  %1052 = vmatprep.subr.bf16.mxu0 0
  %1053 = vmatpush2.bf16.msra.mxu0 0
  %1054 = vmatprep.subr.bf16.mxu0 0
  %1055 = vmatpush2.bf16.msra.mxu0 0
  %1056 = vmatprep.mubr.bf16.mxu0 0
  %1057 = vmatmul.mubr.bf16.gmra.mxu0 %v1022
  %v1058 = vpop.f32.mrf.mxu0
  %v1059 = vadd.f32 0.0, %v1058
  %v1060 = vpop.f32.mrf.mxu0
  %v1061 = vpop.f32.mrf.mxu0
  %v1062 = vpop.f32.mrf.mxu0
  %1063 = vdwg.mxu0
  %v1064 = vadd.f32 %v770, %v1059
  %v1065 = vxor.u32 %v1064, 2147483648
  %v1066 = vmul.f32 %v1065, 1.442695
  %v1067 = vpow.pop %v1066
  %v1068 = vadd.f32 %v1067, 1.0
  %v1069 = vrcp.pop %v1068
  %v1070 = vmul.f32 1.0, %v1069
  %v1071 = vmul.f32 %v1070, 2.0
  %v1072 = vsub.f32 %v1071, 1.0
  %v1073 = vmul.f32 %v1070, %v1010
  %1075 = vrot.lane.b32.xlu0 %v1072, 64
  %v1076 = vpop.permute.xlu0 %1075
  %v1078 = vmul.f32 %v1070, %v1076
  %1080 = vrot.lane.b32.xlu0 %v1078, 32
  %v1081 = vpop.permute.xlu0 %1080
  %v1083 = vadd.f32 %v1073, %v1081
  %v1084 = vtanh.pop %v1083
  %1086 = vrot.lane.b32.xlu0 %v1084, 64
  %v1087 = vpop.permute.xlu0 %1086
  %v1089 = vmul.f32 %v1070, %v1087
  %v1090 = vpack.c.bf16 %v1089, %v1089
  %1092 = vrot.lane.b32.xlu0 %v1090, 32
  %v1093 = vpop.permute.xlu0 %1092
  %v1095 = vsel %vm38, %v1093, 0
  %1097 = vmatprep.subr.bf16.mxu0 0
  %1098 = vmatpush1.bf16.msra.mxu0 0
  %1099 = vmatprep.subr.bf16.mxu0 0
  %1100 = vmatpush1.bf16.msra.mxu0 0
  %1101 = vmatprep.subr.bf16.mxu0 0
  %1102 = vmatpush1.bf16.msra.mxu0 0
  %1103 = vmatprep.subr.bf16.mxu0 0
  %1104 = vmatpush1.bf16.msra.mxu0 0
  %1105 = vmatprep.subr.bf16.mxu0 0
  %1106 = vmatpush1.bf16.msra.mxu0 0
  %1107 = vmatprep.subr.bf16.mxu0 0
  %1108 = vmatpush1.bf16.msra.mxu0 0
  %1109 = vmatprep.subr.bf16.mxu0 0
  %1110 = vmatpush1.bf16.msra.mxu0 %v802
  %1111 = vmatprep.subr.bf16.mxu0 0
  %1112 = vmatpush1.bf16.msra.mxu0 %v801
  %1113 = vmatprep.subr.bf16.mxu0 0
  %1114 = vmatpush2.bf16.msra.mxu0 0
  %1115 = vmatprep.subr.bf16.mxu0 0
  %1116 = vmatpush2.bf16.msra.mxu0 0
  %1117 = vmatprep.subr.bf16.mxu0 0
  %1118 = vmatpush2.bf16.msra.mxu0 0
  %1119 = vmatprep.subr.bf16.mxu0 0
  %1120 = vmatpush2.bf16.msra.mxu0 0
  %1121 = vmatprep.subr.bf16.mxu0 0
  %1122 = vmatpush2.bf16.msra.mxu0 0
  %1123 = vmatprep.subr.bf16.mxu0 0
  %1124 = vmatpush2.bf16.msra.mxu0 0
  %1125 = vmatprep.subr.bf16.mxu0 0
  %1126 = vmatpush2.bf16.msra.mxu0 0
  %1127 = vmatprep.subr.bf16.mxu0 0
  %1128 = vmatpush2.bf16.msra.mxu0 0
  %1129 = vmatprep.mubr.bf16.mxu0 0
  %1130 = vmatmul.mubr.bf16.gmra.mxu0 %v1095
  %v1131 = vpop.f32.mrf.mxu0
  %v1132 = vadd.f32 0.0, %v1131
  %v1133 = vpop.f32.mrf.mxu0
  %v1134 = vpop.f32.mrf.mxu0
  %v1135 = vpop.f32.mrf.mxu0
  %1136 = vdwg.mxu0
  %v1137 = vadd.f32 %v775, %v1132
  %v1138 = vxor.u32 %v1137, 2147483648
  %v1139 = vmul.f32 %v1138, 1.442695
  %v1140 = vpow.pop %v1139
  %v1141 = vadd.f32 %v1140, 1.0
  %v1142 = vrcp.pop %v1141
  %v1143 = vmul.f32 1.0, %v1142
  %v1144 = vmul.f32 %v1143, 2.0
  %v1145 = vsub.f32 %v1144, 1.0
  %v1146 = vmul.f32 %v1143, %v1083
  %1148 = vrot.lane.b32.xlu0 %v1145, 64
  %v1149 = vpop.permute.xlu0 %1148
  %v1151 = vmul.f32 %v1143, %v1149
  %1153 = vrot.lane.b32.xlu0 %v1151, 32
  %v1154 = vpop.permute.xlu0 %1153
  %v1156 = vadd.f32 %v1146, %v1154
  %v1157 = vtanh.pop %v1156
  %1159 = vrot.lane.b32.xlu0 %v1157, 64
  %v1160 = vpop.permute.xlu0 %1159
  %v1162 = vmul.f32 %v1143, %v1160
  %v1163 = vpack.c.bf16 %v1162, %v1162
  %1165 = vrot.lane.b32.xlu0 %v1163, 32
  %v1166 = vpop.permute.xlu0 %1165
  %v1168 = vsel %vm38, %v1166, 0
  %1170 = vmatprep.subr.bf16.mxu0 0
  %1171 = vmatpush1.bf16.msra.mxu0 0
  %1172 = vmatprep.subr.bf16.mxu0 0
  %1173 = vmatpush1.bf16.msra.mxu0 0
  %1174 = vmatprep.subr.bf16.mxu0 0
  %1175 = vmatpush1.bf16.msra.mxu0 0
  %1176 = vmatprep.subr.bf16.mxu0 0
  %1177 = vmatpush1.bf16.msra.mxu0 0
  %1178 = vmatprep.subr.bf16.mxu0 0
  %1179 = vmatpush1.bf16.msra.mxu0 0
  %1180 = vmatprep.subr.bf16.mxu0 0
  %1181 = vmatpush1.bf16.msra.mxu0 0
  %1182 = vmatprep.subr.bf16.mxu0 0
  %1183 = vmatpush1.bf16.msra.mxu0 %v802
  %1184 = vmatprep.subr.bf16.mxu0 0
  %1185 = vmatpush1.bf16.msra.mxu0 %v801
  %1186 = vmatprep.subr.bf16.mxu0 0
  %1187 = vmatpush2.bf16.msra.mxu0 0
  %1188 = vmatprep.subr.bf16.mxu0 0
  %1189 = vmatpush2.bf16.msra.mxu0 0
  %1190 = vmatprep.subr.bf16.mxu0 0
  %1191 = vmatpush2.bf16.msra.mxu0 0
  %1192 = vmatprep.subr.bf16.mxu0 0
  %1193 = vmatpush2.bf16.msra.mxu0 0
  %1194 = vmatprep.subr.bf16.mxu0 0
  %1195 = vmatpush2.bf16.msra.mxu0 0
  %1196 = vmatprep.subr.bf16.mxu0 0
  %1197 = vmatpush2.bf16.msra.mxu0 0
  %1198 = vmatprep.subr.bf16.mxu0 0
  %1199 = vmatpush2.bf16.msra.mxu0 0
  %1200 = vmatprep.subr.bf16.mxu0 0
  %1201 = vmatpush2.bf16.msra.mxu0 0
  %1202 = vmatprep.mubr.bf16.mxu0 0
  %1203 = vmatmul.mubr.bf16.gmra.mxu0 %v1168
  %v1204 = vpop.f32.mrf.mxu0
  %v1205 = vadd.f32 0.0, %v1204
  %v1206 = vpop.f32.mrf.mxu0
  %v1207 = vpop.f32.mrf.mxu0
  %v1208 = vpop.f32.mrf.mxu0
  %1209 = vdwg.mxu0
  %v1210 = vadd.f32 %v778, %v1205
  %v1211 = vxor.u32 %v1210, 2147483648
  %v1212 = vmul.f32 %v1211, 1.442695
  %v1213 = vpow.pop %v1212
  %v1214 = vadd.f32 %v1213, 1.0
  %v1215 = vrcp.pop %v1214
  %v1216 = vmul.f32 1.0, %v1215
  %v1217 = vmul.f32 %v1216, 2.0
  %v1218 = vsub.f32 %v1217, 1.0
  %v1219 = vmul.f32 %v1216, %v1156
  %1221 = vrot.lane.b32.xlu0 %v1218, 64
  %v1222 = vpop.permute.xlu0 %1221
  %v1224 = vmul.f32 %v1216, %v1222
  %1226 = vrot.lane.b32.xlu0 %v1224, 32
  %v1227 = vpop.permute.xlu0 %1226
  %v1229 = vadd.f32 %v1219, %v1227
  %v1230 = vtanh.pop %v1229
  %1232 = vrot.lane.b32.xlu0 %v1230, 64
  %v1233 = vpop.permute.xlu0 %1232
  %v1235 = vmul.f32 %v1216, %v1233
  %v1236 = vpack.c.bf16 %v1235, %v1235
  %1238 = vrot.lane.b32.xlu0 %v1236, 32
  %v1239 = vpop.permute.xlu0 %1238
  %v1241 = vsel %vm38, %v1239, 0
  %1243 = vmatprep.subr.bf16.mxu0 0
  %1244 = vmatpush1.bf16.msra.mxu0 0
  %1245 = vmatprep.subr.bf16.mxu0 0
  %1246 = vmatpush1.bf16.msra.mxu0 0
  %1247 = vmatprep.subr.bf16.mxu0 0
  %1248 = vmatpush1.bf16.msra.mxu0 0
  %1249 = vmatprep.subr.bf16.mxu0 0
  %1250 = vmatpush1.bf16.msra.mxu0 0
  %1251 = vmatprep.subr.bf16.mxu0 0
  %1252 = vmatpush1.bf16.msra.mxu0 0
  %1253 = vmatprep.subr.bf16.mxu0 0
  %1254 = vmatpush1.bf16.msra.mxu0 0
  %1255 = vmatprep.subr.bf16.mxu0 0
  %1256 = vmatpush1.bf16.msra.mxu0 %v802
  %1257 = vmatprep.subr.bf16.mxu0 0
  %1258 = vmatpush1.bf16.msra.mxu0 %v801
  %1259 = vmatprep.subr.bf16.mxu0 0
  %1260 = vmatpush2.bf16.msra.mxu0 0
  %1261 = vmatprep.subr.bf16.mxu0 0
  %1262 = vmatpush2.bf16.msra.mxu0 0
  %1263 = vmatprep.subr.bf16.mxu0 0
  %1264 = vmatpush2.bf16.msra.mxu0 0
  %1265 = vmatprep.subr.bf16.mxu0 0
  %1266 = vmatpush2.bf16.msra.mxu0 0
  %1267 = vmatprep.subr.bf16.mxu0 0
  %1268 = vmatpush2.bf16.msra.mxu0 0
  %1269 = vmatprep.subr.bf16.mxu0 0
  %1270 = vmatpush2.bf16.msra.mxu0 0
  %1271 = vmatprep.subr.bf16.mxu0 0
  %1272 = vmatpush2.bf16.msra.mxu0 0
  %1273 = vmatprep.subr.bf16.mxu0 0
  %1274 = vmatpush2.bf16.msra.mxu0 0
  %1275 = vmatprep.mubr.bf16.mxu0 0
  %1276 = vmatmul.mubr.bf16.gmra.mxu0 %v1241
  %v1277 = vpop.f32.mrf.mxu0
  %v1278 = vadd.f32 0.0, %v1277
  %v1279 = vpop.f32.mrf.mxu0
  %v1280 = vpop.f32.mrf.mxu0
  %v1281 = vpop.f32.mrf.mxu0
  %1282 = vdwg.mxu0
  %v1283 = vadd.f32 %v783, %v1278
  %v1284 = vxor.u32 %v1283, 2147483648
  %v1285 = vmul.f32 %v1284, 1.442695
  %v1286 = vpow.pop %v1285
  %v1287 = vadd.f32 %v1286, 1.0
  %v1288 = vrcp.pop %v1287
  %v1289 = vmul.f32 1.0, %v1288
  %v1290 = vmul.f32 %v1289, 2.0
  %v1291 = vsub.f32 %v1290, 1.0
  %v1292 = vmul.f32 %v1289, %v1229
  %1294 = vrot.lane.b32.xlu0 %v1291, 64
  %v1295 = vpop.permute.xlu0 %1294
  %v1297 = vmul.f32 %v1289, %v1295
  %1299 = vrot.lane.b32.xlu0 %v1297, 32
  %v1300 = vpop.permute.xlu0 %1299
  %v1302 = vadd.f32 %v1292, %v1300
  %v1303 = vtanh.pop %v1302
  %1305 = vrot.lane.b32.xlu0 %v1303, 64
  %v1306 = vpop.permute.xlu0 %1305
  %v1308 = vmul.f32 %v1289, %v1306
  %v1309 = vpack.c.bf16 %v1308, %v1308
  %1311 = vrot.lane.b32.xlu0 %v1309, 32
  %v1312 = vpop.permute.xlu0 %1311
  %v1314 = vsel %vm38, %v1312, 0
  %1316 = vmatprep.subr.bf16.mxu0 0
  %1317 = vmatpush1.bf16.msra.mxu0 0
  %1318 = vmatprep.subr.bf16.mxu0 0
  %1319 = vmatpush1.bf16.msra.mxu0 0
  %1320 = vmatprep.subr.bf16.mxu0 0
  %1321 = vmatpush1.bf16.msra.mxu0 0
  %1322 = vmatprep.subr.bf16.mxu0 0
  %1323 = vmatpush1.bf16.msra.mxu0 0
  %1324 = vmatprep.subr.bf16.mxu0 0
  %1325 = vmatpush1.bf16.msra.mxu0 0
  %1326 = vmatprep.subr.bf16.mxu0 0
  %1327 = vmatpush1.bf16.msra.mxu0 0
  %1328 = vmatprep.subr.bf16.mxu0 0
  %1329 = vmatpush1.bf16.msra.mxu0 %v802
  %1330 = vmatprep.subr.bf16.mxu0 0
  %1331 = vmatpush1.bf16.msra.mxu0 %v801
  %1332 = vmatprep.subr.bf16.mxu0 0
  %1333 = vmatpush2.bf16.msra.mxu0 0
  %1334 = vmatprep.subr.bf16.mxu0 0
  %1335 = vmatpush2.bf16.msra.mxu0 0
  %1336 = vmatprep.subr.bf16.mxu0 0
  %1337 = vmatpush2.bf16.msra.mxu0 0
  %1338 = vmatprep.subr.bf16.mxu0 0
  %1339 = vmatpush2.bf16.msra.mxu0 0
  %1340 = vmatprep.subr.bf16.mxu0 0
  %1341 = vmatpush2.bf16.msra.mxu0 0
  %1342 = vmatprep.subr.bf16.mxu0 0
  %1343 = vmatpush2.bf16.msra.mxu0 0
  %1344 = vmatprep.subr.bf16.mxu0 0
  %1345 = vmatpush2.bf16.msra.mxu0 0
  %1346 = vmatprep.subr.bf16.mxu0 0
  %1347 = vmatpush2.bf16.msra.mxu0 0
  %1348 = vmatprep.mubr.bf16.mxu0 0
  %1349 = vmatmul.mubr.bf16.gmra.mxu0 %v1314
  %v1350 = vpop.f32.mrf.mxu0
  %v1351 = vadd.f32 0.0, %v1350
  %v1352 = vpop.f32.mrf.mxu0
  %v1353 = vpop.f32.mrf.mxu0
  %v1354 = vpop.f32.mrf.mxu0
  %1355 = vdwg.mxu0
  %v1356 = vadd.f32 %v786, %v1351
  %v1357 = vxor.u32 %v1356, 2147483648
  %v1358 = vmul.f32 %v1357, 1.442695
  %v1359 = vpow.pop %v1358
  %v1360 = vadd.f32 %v1359, 1.0
  %v1361 = vrcp.pop %v1360
  %v1362 = vmul.f32 1.0, %v1361
  %v1363 = vmul.f32 %v1362, 2.0
  %v1364 = vsub.f32 %v1363, 1.0
  %v1365 = vmul.f32 %v1362, %v1302
  %1367 = vrot.lane.b32.xlu0 %v1364, 64
  %v1368 = vpop.permute.xlu0 %1367
  %v1370 = vmul.f32 %v1362, %v1368
  %1372 = vrot.lane.b32.xlu0 %v1370, 32
  %v1373 = vpop.permute.xlu0 %1372
  %v1375 = vadd.f32 %v1365, %v1373
  %v1376 = vtanh.pop %v1375
  %1378 = vrot.lane.b32.xlu0 %v1376, 64
  %v1379 = vpop.permute.xlu0 %1378
  %v1381 = vmul.f32 %v1362, %v1379
  %1390 = vrot.lane.b32.xlu0 %v870, 64
  %v1391 = vpop.permute.xlu0 %1390
  %1392 = vrot.lane.b32.xlu0 %v943, 64
  %v1393 = vpop.permute.xlu0 %1392
  %1394 = vrot.lane.b32.xlu0 %v1016, 64
  %v1395 = vpop.permute.xlu0 %1394
  %1396 = vrot.lane.b32.xlu0 %v1089, 64
  %v1397 = vpop.permute.xlu0 %1396
  %1398 = vrot.lane.b32.xlu0 %v1162, 64
  %v1399 = vpop.permute.xlu0 %1398
  %1400 = vrot.lane.b32.xlu0 %v1235, 64
  %v1401 = vpop.permute.xlu0 %1400
  %1402 = vrot.lane.b32.xlu0 %v1308, 64
  %v1403 = vpop.permute.xlu0 %1402
  %1404 = vrot.lane.b32.xlu0 %v1381, 64
  %v1405 = vpop.permute.xlu0 %1404
  %vm1414 = vcmask 523520
  %1415 = vst.msk [vmem:[%s5] sm:$0xff] %vm1414, %v1391
  %1416 = vst.msk [vmem:[%s5 + $0x8] sm:$0xff] %vm1414, %v1393
  %1417 = vst.msk [vmem:[%s5 + $0x10] sm:$0xff] %vm1414, %v1395
  %1418 = vst.msk [vmem:[%s5 + $0x18] sm:$0xff] %vm1414, %v1397
  %1419 = vst.msk [vmem:[%s5 + $0x20] sm:$0xff] %vm1414, %v1399
  %1420 = vst.msk [vmem:[%s5 + $0x28] sm:$0xff] %vm1414, %v1401
  %1421 = vst.msk [vmem:[%s5 + $0x30] sm:$0xff] %vm1414, %v1403
  %1422 = vst.msk [vmem:[%s5 + $0x38] sm:$0xff] %vm1414, %v1405
  // Predicated region
  $region22: #{stack_rnn_forward.1} parent=0 // pred_check
    _
  $region23: #{stack_rnn_forward.1} parent=0 // pred_check_branch
    %1424 = sbr.rel (0) target = $region25
  $region24: #{stack_rnn_forward.1} parent=0 // pred_region
    _
  $region25: #{stack_rnn_forward.1} parent=0 // pred_fallthru
    _
  // Predicated region
  $region26: #{stack_rnn_forward.1} parent=0 // pred_check
    _
  $region27: #{stack_rnn_forward.1} parent=0 // pred_check_branch
    %1426 = sbr.rel (0) target = $region29
  $region28: #{stack_rnn_forward.1} parent=0 // pred_region
    _
  $region29: #{stack_rnn_forward.1} parent=0 // pred_fallthru
    _

</llo_original>
